<compile_context>
chip_gen: v5e
topology: v5e:2x2
jax: 0.10.0
libtpu: 0.0.40
codegen_flags: <defaults>
</compile_context>

<pallas_src>
import jax
import jax.numpy as jnp
from jax.experimental import pallas as pl
from jax.experimental.pallas import tpu as pltpu

BN_EPS = 1e-5
GRID1 = 16            # conv1 output spatial size (16 x 16)
P = GRID1 * GRID1     # 256 flat positions (lane-dense axis), q = i*16 + j
N_VALID2 = 15 * 15    # conv2 has 225 valid positions on the padded 16x16 grid
INV_N2 = 1.0 / float(N_VALID2)
HID_PAD = 256         # lin1 hidden features padded 226 -> 256


# ---------------- fused Pallas kernel ----------------

def _vpu_conv_rows(w_smem, patch_rows, n_out):
    """Tiny conv on the VPU: row c = sum_k w[c, k] * patch_rows[k]; rows stay separate."""
    rows = []
    for c in range(n_out):
        acc = w_smem[c, 0] * patch_rows[0]
        for k in range(1, len(patch_rows)):
            acc = acc + w_smem[c, k] * patch_rows[k]
        rows.append(acc)                               # each (1, P)
    return rows


def _bn_relu_full(row):
    """Training-mode BN (batch stats over all 256 positions) + ReLU on one (1, P) row."""
    m = jnp.mean(row, axis=1, keepdims=True)
    d = row - m
    v = jnp.mean(d * d, axis=1, keepdims=True)         # biased variance
    return jnp.maximum(d * jax.lax.rsqrt(v + BN_EPS), 0.0)


def _bn_relu_masked(row, mask):
    """Training-mode BN over the 225 valid positions (mask precomputed) + ReLU."""
    row = row * mask
    m = jnp.sum(row, axis=1, keepdims=True) * INV_N2
    d = (row - m) * mask
    v = jnp.sum(d * d, axis=1, keepdims=True) * INV_N2
    # no re-mask afterwards: rows of the stacked lin1 weight at invalid
    # positions are zero, so invalid lanes never reach the output.
    return jnp.maximum((row - m) * jax.lax.rsqrt(v + BN_EPS), 0.0)


def _dqn_fused_kernel(c1w_ref, c2w_ref, loc_ref,                    # SMEM scalars
                      p1_ref, mask2_ref, w1l_ref, b1_ref, w2_ref, b2_ref,  # small VMEM
                      w1s_hbm_ref,                                  # big lin1 weight, pl.ANY
                      o_ref,
                      w1s_vmem, w1s_sem):                           # scratch
    f32 = jnp.float32

    # Kick off the big lin1-weight DMA immediately; it overlaps the conv/bn phase
    # and is only waited on right before the lin1 dot.
    w1s_copy = pltpu.make_async_copy(w1s_hbm_ref, w1s_vmem, w1s_sem)
    w1s_copy.start()

    # ---- conv1 (3x3, stride 2): K=9 VPU FMAs on lane-dense (1, 256) patch rows
    p1_rows = [p1_ref[pl.ds(k, 1), :] for k in range(9)]
    y1_rows = _vpu_conv_rows(c1w_ref, p1_rows, n_out=2)

    # bn1 + relu, per channel (all 256 positions valid)
    y1_rows = [_bn_relu_full(r) for r in y1_rows]

    # ---- conv2 (2x2, stride 1): patches are pure lane shifts of the flat grid.
    # offset(di, dj) = di*16 + dj -> {0, 1, 16, 17}; wrapped lanes land only on
    # invalid positions and are masked in bn2 / zeroed by the weight layout.
    offs = (0, 1, 16, 17)
    p2_rows = []
    for c in range(2):
        row = y1_rows[c]
        for off in offs:                               # k = c*4 + offset_index
            p2_rows.append(row if off == 0 else pltpu.roll(row, shift=P - off, axis=1))
    y2_rows = _vpu_conv_rows(c2w_ref, p2_rows, n_out=2)

    # bn2 + relu over the 225 valid positions (precomputed mask), per channel
    mask = mask2_ref[...]
    y2_rows = [_bn_relu_masked(r, mask) for r in y2_rows]

    # ---- lin1: lane-concat the two channel rows -> (1, 512), single bf16 MXU dot
    a = jnp.concatenate(y2_rows, axis=1).astype(jnp.bfloat16)       # (1, 512)
    w1s_copy.wait()                                                  # weight DMA done
    h = jnp.dot(a, w1s_vmem[...], preferred_element_type=f32)        # (1, 256)
    h = (h
         + loc_ref[0, 0] * w1l_ref[pl.ds(0, 1), :]
         + loc_ref[0, 1] * w1l_ref[pl.ds(1, 1), :]
         + b1_ref[...])
    h = jnp.maximum(h, 0.0)                            # (1, 256); pad lanes stay 0

    # ---- lin2 on the VPU (4 mul + lane-reduce), then exact softmax(dim=1)
    w2 = w2_ref[...]                                   # (4, 256)
    z_cols = [jnp.sum(h * w2[c:c + 1, :], axis=1, keepdims=True) for c in range(4)]
    z = jnp.concatenate(z_cols, axis=1) + b2_ref[...]  # (1, 4)
    z = z - jnp.max(z, axis=1, keepdims=True)
    e = jnp.exp(z)
    o_ref[...] = e / jnp.sum(e, axis=1, keepdims=True)


def _fused_call(packed, location, p1):
    smem = pl.BlockSpec(memory_space=pltpu.MemorySpace.SMEM)
    vmem = pl.BlockSpec(memory_space=pltpu.MemorySpace.VMEM)
    anym = pl.BlockSpec(memory_space=pl.ANY)           # raw HBM ref; manual DMA in-kernel
    return pl.pallas_call(
        _dqn_fused_kernel,
        out_shape=jax.ShapeDtypeStruct((1, 4), jnp.float32),
        in_specs=[smem, smem, smem,                    # conv1_w, conv2_w, location
                  vmem, vmem, vmem, vmem, vmem, vmem,  # p1, mask2, w1loc, b1, w2, b2
                  anym],                               # stacked bf16 lin1 weight
        out_specs=vmem,
        scratch_shapes=[pltpu.VMEM((2 * P, HID_PAD), jnp.bfloat16),
                        pltpu.SemaphoreType.DMA],
    )(packed["conv1_w"], packed["conv2_w"], location,
      p1, packed["mask2"], packed["w1loc"], packed["b1"], packed["w2"], packed["b2"],
      packed["w1s"])


# ---------------- JAX glue ----------------

def _conv1_patches(image):
    """im2col for conv1 in lane-dense (K=9, P=256) layout; row order (di*3+dj)."""
    x = jnp.pad(image[0, 0], ((1, 1), (1, 1)))         # (33, 33), padding=1
    rows = [x[di:di + 31:2, dj:dj + 31:2].reshape(1, -1)
            for di in range(3) for dj in range(3)]
    return jnp.concatenate(rows, axis=0)               # (9, 256)


def pack_params(params):
    """One-time repack of weights into the kernel's lane-dense / padded layout."""
    w1t = params["lin1_w"].T                           # (452, 226)

    def chan_block(rows_225x226):
        # scatter rows p = i*15+j -> q = i*16+j, zero-pad invalid rows and cols 226->256
        w = rows_225x226.reshape(15, 15, 226)
        w = jnp.pad(w, ((0, 1), (0, 1), (0, HID_PAD - 226)))
        return w.reshape(P, HID_PAD)                   # (256, 256)

    # stacked lin1 weight: (512, 256) bf16; rows 0..255 = channel 0, 256..511 = channel 1
    w1s = jnp.concatenate([chan_block(w1t[0:225]), chan_block(w1t[225:450])],
                          axis=0).astype(jnp.bfloat16)

    # bn2 validity mask over the padded 16x16 grid (i < 15 and j < 15)
    q = jnp.arange(P)
    mask2 = jnp.where((q % GRID1 < 15) & (q // GRID1 < 15), 1.0, 0.0)
    mask2 = mask2.reshape(1, P).astype(jnp.float32)

    return {
        "conv1_w": params["conv1_w"].reshape(2, 9),
        "conv2_w": params["conv2_w"].reshape(2, 8),
        "w1s": w1s,                                                          # (512, 256) bf16
        "w1loc": jnp.pad(w1t[450:452], ((0, 0), (0, HID_PAD - 226))),        # (2, 256)
        "b1": jnp.pad(params["lin1_b"], (0, HID_PAD - 226)).reshape(1, HID_PAD),
        "w2": jnp.pad(params["lin2_w"], ((0, 0), (0, HID_PAD - 226))),       # (4, 256)
        "b2": params["lin2_b"].reshape(1, 4),
        "mask2": mask2,                                                      # (1, 256)
    }


def dqn_forward(packed, image, location):
    # image: (1, 1, 31, 31) NCHW, location: (1, 2)
    p1 = _conv1_patches(image)                         # (9, 256)
    return _fused_call(packed, location, p1)           # (1, 4)


def init_params(key):
    # Conv biases are omitted: they cancel exactly through training-mode BN
    # (gamma=1, beta=0), so the forward output is identical with or without them.
    ks = jax.random.split(key, 6)
    return {
        "conv1_w": 0.1 * jax.random.normal(ks[0], (2, 1, 3, 3), jnp.float32),
        "conv2_w": 0.1 * jax.random.normal(ks[1], (2, 2, 2, 2), jnp.float32),
        "lin1_w": 0.05 * jax.random.normal(ks[2], (226, 452), jnp.float32),
        "lin1_b": 0.05 * jax.random.normal(ks[3], (226,), jnp.float32),
        "lin2_w": 0.05 * jax.random.normal(ks[4], (4, 226), jnp.float32),
        "lin2_b": 0.05 * jax.random.normal(ks[5], (4,), jnp.float32),
    }


def dqn_reference(params, image, location):
    """Plain-JAX reference with the standard NCHW layout (for correctness check)."""
    def bn_relu(y):
        m = jnp.mean(y, axis=(0, 2, 3), keepdims=True)
        v = jnp.mean((y - m) ** 2, axis=(0, 2, 3), keepdims=True)
        return jnp.maximum((y - m) * jax.lax.rsqrt(v + BN_EPS), 0.0)

    y = jax.lax.conv_general_dilated(
        image, params["conv1_w"], window_strides=(2, 2), padding=((1, 1), (1, 1)),
        dimension_numbers=("NCHW", "OIHW", "NCHW"))
    y = bn_relu(y)                                     # (1, 2, 16, 16)
    y = jax.lax.conv_general_dilated(
        y, params["conv2_w"], window_strides=(1, 1), padding="VALID",
        dimension_numbers=("NCHW", "OIHW", "NCHW"))
    y = bn_relu(y)                                     # (1, 2, 15, 15)
    feat = jnp.concatenate([y.reshape(1, -1), location], axis=1)   # (1, 452)
    h = jnp.maximum(feat @ params["lin1_w"].T + params["lin1_b"], 0.0)
    z = h @ params["lin2_w"].T + params["lin2_b"]
    return jax.nn.softmax(z, axis=1)


if __name__ == "__main__":
    key = jax.random.PRNGKey(0)
    pkey, ikey, lkey = jax.random.split(key, 3)
    params = init_params(pkey)
    # 31x31 input -> conv1 -> 16x16 -> conv2 -> 15x15; 2*15*15 + 2 = 452
    image = jax.random.normal(ikey, (1, 1, 31, 31), jnp.float32)
    location = jax.random.normal(lkey, (1, 2), jnp.float32)

    packed = pack_params(params)                       # one-time weight repack
    fwd = jax.jit(dqn_forward)
    out = jax.block_until_ready(fwd(packed, image, location))

    assert out.shape == (1, 4)
    assert bool(jnp.isfinite(out).all())
    assert abs(float(out.sum()) - 1.0) < 1e-4          # exact softmax normalization

    ref = dqn_reference(params, image, location)
    assert bool(jnp.allclose(out, ref, atol=5e-3)), (out, ref)
    print("KERNEL_OK")
</pallas_src>

<mosaic_0001>
module attributes {stable_mosaic.version = 11 : i64} {
  func.func @_dqn_fused_kernel(%arg0: memref<2x9xf32, #tpu.memory_space<smem>>, %arg1: memref<2x8xf32, #tpu.memory_space<smem>>, %arg2: memref<1x2xf32, #tpu.memory_space<smem>>, %arg3: memref<9x256xf32, #tpu.memory_space<vmem>>, %arg4: memref<1x256xf32, #tpu.memory_space<vmem>>, %arg5: memref<2x256xf32, #tpu.memory_space<vmem>>, %arg6: memref<1x256xf32, #tpu.memory_space<vmem>>, %arg7: memref<4x256xf32, #tpu.memory_space<vmem>>, %arg8: memref<1x4xf32, #tpu.memory_space<vmem>>, %arg9: memref<512x256xbf16, #tpu.memory_space<any>>, %arg10: memref<1x4xf32, #tpu.memory_space<vmem>>, %arg11: memref<512x256xbf16, #tpu.memory_space<vmem>>, %arg12: memref<!tpu.dma_semaphore, #tpu.memory_space<semaphore_mem>>) attributes {dimension_semantics = [], scalar_prefetch = 0 : i64, scratch_operands = 2 : i64, tpu.core_type = #tpu.core_type<tc>} {
    tpu.enqueue_dma source(%arg9 : memref<512x256xbf16, #tpu.memory_space<any>>) target(%arg11 : memref<512x256xbf16, #tpu.memory_space<vmem>>) target_semaphore(%arg12 : memref<!tpu.dma_semaphore, #tpu.memory_space<semaphore_mem>>)
    %c0 = arith.constant 0 : index
    %c0_0 = arith.constant 0 : index
    %0 = vector.load %arg3[%c0, %c0_0] : memref<9x256xf32, #tpu.memory_space<vmem>>, vector<1x256xf32>
    %c1 = arith.constant 1 : index
    %c0_1 = arith.constant 0 : index
    %1 = vector.load %arg3[%c1, %c0_1] : memref<9x256xf32, #tpu.memory_space<vmem>>, vector<1x256xf32>
    %c2 = arith.constant 2 : index
    %c0_2 = arith.constant 0 : index
    %2 = vector.load %arg3[%c2, %c0_2] : memref<9x256xf32, #tpu.memory_space<vmem>>, vector<1x256xf32>
    %c3 = arith.constant 3 : index
    %c0_3 = arith.constant 0 : index
    %3 = vector.load %arg3[%c3, %c0_3] : memref<9x256xf32, #tpu.memory_space<vmem>>, vector<1x256xf32>
    %c4 = arith.constant 4 : index
    %c0_4 = arith.constant 0 : index
    %4 = vector.load %arg3[%c4, %c0_4] : memref<9x256xf32, #tpu.memory_space<vmem>>, vector<1x256xf32>
    %c5 = arith.constant 5 : index
    %c0_5 = arith.constant 0 : index
    %5 = vector.load %arg3[%c5, %c0_5] : memref<9x256xf32, #tpu.memory_space<vmem>>, vector<1x256xf32>
    %c6 = arith.constant 6 : index
    %c0_6 = arith.constant 0 : index
    %6 = vector.load %arg3[%c6, %c0_6] : memref<9x256xf32, #tpu.memory_space<vmem>>, vector<1x256xf32>
    %c7 = arith.constant 7 : index
    %c0_7 = arith.constant 0 : index
    %7 = vector.load %arg3[%c7, %c0_7] : memref<9x256xf32, #tpu.memory_space<vmem>>, vector<1x256xf32>
    %c8 = arith.constant 8 : index
    %c0_8 = arith.constant 0 : index
    %8 = vector.load %arg3[%c8, %c0_8] : memref<9x256xf32, #tpu.memory_space<vmem>>, vector<1x256xf32>
    %c0_9 = arith.constant 0 : index
    %c0_10 = arith.constant 0 : index
    %9 = memref.load %arg0[%c0_9, %c0_10] : memref<2x9xf32, #tpu.memory_space<smem>>
    %10 = vector.broadcast %9 : f32 to vector<1x256xf32>
    %11 = arith.mulf %10, %0 : vector<1x256xf32>
    %c0_11 = arith.constant 0 : index
    %c1_12 = arith.constant 1 : index
    %12 = memref.load %arg0[%c0_11, %c1_12] : memref<2x9xf32, #tpu.memory_space<smem>>
    %13 = vector.broadcast %12 : f32 to vector<1x256xf32>
    %14 = arith.mulf %13, %1 : vector<1x256xf32>
    %15 = arith.addf %11, %14 : vector<1x256xf32>
    %c0_13 = arith.constant 0 : index
    %c2_14 = arith.constant 2 : index
    %16 = memref.load %arg0[%c0_13, %c2_14] : memref<2x9xf32, #tpu.memory_space<smem>>
    %17 = vector.broadcast %16 : f32 to vector<1x256xf32>
    %18 = arith.mulf %17, %2 : vector<1x256xf32>
    %19 = arith.addf %15, %18 : vector<1x256xf32>
    %c0_15 = arith.constant 0 : index
    %c3_16 = arith.constant 3 : index
    %20 = memref.load %arg0[%c0_15, %c3_16] : memref<2x9xf32, #tpu.memory_space<smem>>
    %21 = vector.broadcast %20 : f32 to vector<1x256xf32>
    %22 = arith.mulf %21, %3 : vector<1x256xf32>
    %23 = arith.addf %19, %22 : vector<1x256xf32>
    %c0_17 = arith.constant 0 : index
    %c4_18 = arith.constant 4 : index
    %24 = memref.load %arg0[%c0_17, %c4_18] : memref<2x9xf32, #tpu.memory_space<smem>>
    %25 = vector.broadcast %24 : f32 to vector<1x256xf32>
    %26 = arith.mulf %25, %4 : vector<1x256xf32>
    %27 = arith.addf %23, %26 : vector<1x256xf32>
    %c0_19 = arith.constant 0 : index
    %c5_20 = arith.constant 5 : index
    %28 = memref.load %arg0[%c0_19, %c5_20] : memref<2x9xf32, #tpu.memory_space<smem>>
    %29 = vector.broadcast %28 : f32 to vector<1x256xf32>
    %30 = arith.mulf %29, %5 : vector<1x256xf32>
    %31 = arith.addf %27, %30 : vector<1x256xf32>
    %c0_21 = arith.constant 0 : index
    %c6_22 = arith.constant 6 : index
    %32 = memref.load %arg0[%c0_21, %c6_22] : memref<2x9xf32, #tpu.memory_space<smem>>
    %33 = vector.broadcast %32 : f32 to vector<1x256xf32>
    %34 = arith.mulf %33, %6 : vector<1x256xf32>
    %35 = arith.addf %31, %34 : vector<1x256xf32>
    %c0_23 = arith.constant 0 : index
    %c7_24 = arith.constant 7 : index
    %36 = memref.load %arg0[%c0_23, %c7_24] : memref<2x9xf32, #tpu.memory_space<smem>>
    %37 = vector.broadcast %36 : f32 to vector<1x256xf32>
    %38 = arith.mulf %37, %7 : vector<1x256xf32>
    %39 = arith.addf %35, %38 : vector<1x256xf32>
    %c0_25 = arith.constant 0 : index
    %c8_26 = arith.constant 8 : index
    %40 = memref.load %arg0[%c0_25, %c8_26] : memref<2x9xf32, #tpu.memory_space<smem>>
    %41 = vector.broadcast %40 : f32 to vector<1x256xf32>
    %42 = arith.mulf %41, %8 : vector<1x256xf32>
    %43 = arith.addf %39, %42 : vector<1x256xf32>
    %c1_27 = arith.constant 1 : index
    %c0_28 = arith.constant 0 : index
    %44 = memref.load %arg0[%c1_27, %c0_28] : memref<2x9xf32, #tpu.memory_space<smem>>
    %45 = vector.broadcast %44 : f32 to vector<1x256xf32>
    %46 = arith.mulf %45, %0 : vector<1x256xf32>
    %c1_29 = arith.constant 1 : index
    %c1_30 = arith.constant 1 : index
    %47 = memref.load %arg0[%c1_29, %c1_30] : memref<2x9xf32, #tpu.memory_space<smem>>
    %48 = vector.broadcast %47 : f32 to vector<1x256xf32>
    %49 = arith.mulf %48, %1 : vector<1x256xf32>
    %50 = arith.addf %46, %49 : vector<1x256xf32>
    %c1_31 = arith.constant 1 : index
    %c2_32 = arith.constant 2 : index
    %51 = memref.load %arg0[%c1_31, %c2_32] : memref<2x9xf32, #tpu.memory_space<smem>>
    %52 = vector.broadcast %51 : f32 to vector<1x256xf32>
    %53 = arith.mulf %52, %2 : vector<1x256xf32>
    %54 = arith.addf %50, %53 : vector<1x256xf32>
    %c1_33 = arith.constant 1 : index
    %c3_34 = arith.constant 3 : index
    %55 = memref.load %arg0[%c1_33, %c3_34] : memref<2x9xf32, #tpu.memory_space<smem>>
    %56 = vector.broadcast %55 : f32 to vector<1x256xf32>
    %57 = arith.mulf %56, %3 : vector<1x256xf32>
    %58 = arith.addf %54, %57 : vector<1x256xf32>
    %c1_35 = arith.constant 1 : index
    %c4_36 = arith.constant 4 : index
    %59 = memref.load %arg0[%c1_35, %c4_36] : memref<2x9xf32, #tpu.memory_space<smem>>
    %60 = vector.broadcast %59 : f32 to vector<1x256xf32>
    %61 = arith.mulf %60, %4 : vector<1x256xf32>
    %62 = arith.addf %58, %61 : vector<1x256xf32>
    %c1_37 = arith.constant 1 : index
    %c5_38 = arith.constant 5 : index
    %63 = memref.load %arg0[%c1_37, %c5_38] : memref<2x9xf32, #tpu.memory_space<smem>>
    %64 = vector.broadcast %63 : f32 to vector<1x256xf32>
    %65 = arith.mulf %64, %5 : vector<1x256xf32>
    %66 = arith.addf %62, %65 : vector<1x256xf32>
    %c1_39 = arith.constant 1 : index
    %c6_40 = arith.constant 6 : index
    %67 = memref.load %arg0[%c1_39, %c6_40] : memref<2x9xf32, #tpu.memory_space<smem>>
    %68 = vector.broadcast %67 : f32 to vector<1x256xf32>
    %69 = arith.mulf %68, %6 : vector<1x256xf32>
    %70 = arith.addf %66, %69 : vector<1x256xf32>
    %c1_41 = arith.constant 1 : index
    %c7_42 = arith.constant 7 : index
    %71 = memref.load %arg0[%c1_41, %c7_42] : memref<2x9xf32, #tpu.memory_space<smem>>
    %72 = vector.broadcast %71 : f32 to vector<1x256xf32>
    %73 = arith.mulf %72, %7 : vector<1x256xf32>
    %74 = arith.addf %70, %73 : vector<1x256xf32>
    %c1_43 = arith.constant 1 : index
    %c8_44 = arith.constant 8 : index
    %75 = memref.load %arg0[%c1_43, %c8_44] : memref<2x9xf32, #tpu.memory_space<smem>>
    %76 = vector.broadcast %75 : f32 to vector<1x256xf32>
    %77 = arith.mulf %76, %8 : vector<1x256xf32>
    %78 = arith.addf %74, %77 : vector<1x256xf32>
    %cst = arith.constant dense<0.000000e+00> : vector<1xf32>
    %79 = vector.multi_reduction <add>, %43, %cst [1] : vector<1x256xf32> to vector<1xf32>
    %80 = vector.shape_cast %79 : vector<1xf32> to vector<1x1xf32>
    %cst_45 = arith.constant 2.560000e+02 : f32
    %81 = vector.broadcast %cst_45 : f32 to vector<1x1xf32>
    %82 = arith.divf %80, %81 : vector<1x1xf32>
    %83 = vector.broadcast %82 : vector<1x1xf32> to vector<1x256xf32>
    %84 = arith.subf %43, %83 : vector<1x256xf32>
    %85 = arith.mulf %84, %84 : vector<1x256xf32>
    %cst_46 = arith.constant dense<0.000000e+00> : vector<1xf32>
    %86 = vector.multi_reduction <add>, %85, %cst_46 [1] : vector<1x256xf32> to vector<1xf32>
    %87 = vector.shape_cast %86 : vector<1xf32> to vector<1x1xf32>
    %cst_47 = arith.constant 2.560000e+02 : f32
    %88 = vector.broadcast %cst_47 : f32 to vector<1x1xf32>
    %89 = arith.divf %87, %88 : vector<1x1xf32>
    %cst_48 = arith.constant 9.99999974E-6 : f32
    %90 = vector.broadcast %cst_48 : f32 to vector<1x1xf32>
    %91 = arith.addf %89, %90 : vector<1x1xf32>
    %92 = math.rsqrt %91 : vector<1x1xf32>
    %93 = vector.broadcast %92 : vector<1x1xf32> to vector<1x256xf32>
    %94 = arith.mulf %84, %93 : vector<1x256xf32>
    %cst_49 = arith.constant 0.000000e+00 : f32
    %95 = vector.broadcast %cst_49 : f32 to vector<1x256xf32>
    %96 = arith.maximumf %94, %95 : vector<1x256xf32>
    %cst_50 = arith.constant dense<0.000000e+00> : vector<1xf32>
    %97 = vector.multi_reduction <add>, %78, %cst_50 [1] : vector<1x256xf32> to vector<1xf32>
    %98 = vector.shape_cast %97 : vector<1xf32> to vector<1x1xf32>
    %cst_51 = arith.constant 2.560000e+02 : f32
    %99 = vector.broadcast %cst_51 : f32 to vector<1x1xf32>
    %100 = arith.divf %98, %99 : vector<1x1xf32>
    %101 = vector.broadcast %100 : vector<1x1xf32> to vector<1x256xf32>
    %102 = arith.subf %78, %101 : vector<1x256xf32>
    %103 = arith.mulf %102, %102 : vector<1x256xf32>
    %cst_52 = arith.constant dense<0.000000e+00> : vector<1xf32>
    %104 = vector.multi_reduction <add>, %103, %cst_52 [1] : vector<1x256xf32> to vector<1xf32>
    %105 = vector.shape_cast %104 : vector<1xf32> to vector<1x1xf32>
    %cst_53 = arith.constant 2.560000e+02 : f32
    %106 = vector.broadcast %cst_53 : f32 to vector<1x1xf32>
    %107 = arith.divf %105, %106 : vector<1x1xf32>
    %cst_54 = arith.constant 9.99999974E-6 : f32
    %108 = vector.broadcast %cst_54 : f32 to vector<1x1xf32>
    %109 = arith.addf %107, %108 : vector<1x1xf32>
    %110 = math.rsqrt %109 : vector<1x1xf32>
    %111 = vector.broadcast %110 : vector<1x1xf32> to vector<1x256xf32>
    %112 = arith.mulf %102, %111 : vector<1x256xf32>
    %cst_55 = arith.constant 0.000000e+00 : f32
    %113 = vector.broadcast %cst_55 : f32 to vector<1x256xf32>
    %114 = arith.maximumf %112, %113 : vector<1x256xf32>
    %c255_i32 = arith.constant 255 : i32
    %115 = tpu.dynamic_rotate %96 by %c255_i32 dim 1 : vector<1x256xf32>, i32 -> vector<1x256xf32>
    %c240_i32 = arith.constant 240 : i32
    %116 = tpu.dynamic_rotate %96 by %c240_i32 dim 1 : vector<1x256xf32>, i32 -> vector<1x256xf32>
    %c239_i32 = arith.constant 239 : i32
    %117 = tpu.dynamic_rotate %96 by %c239_i32 dim 1 : vector<1x256xf32>, i32 -> vector<1x256xf32>
    %c255_i32_56 = arith.constant 255 : i32
    %118 = tpu.dynamic_rotate %114 by %c255_i32_56 dim 1 : vector<1x256xf32>, i32 -> vector<1x256xf32>
    %c240_i32_57 = arith.constant 240 : i32
    %119 = tpu.dynamic_rotate %114 by %c240_i32_57 dim 1 : vector<1x256xf32>, i32 -> vector<1x256xf32>
    %c239_i32_58 = arith.constant 239 : i32
    %120 = tpu.dynamic_rotate %114 by %c239_i32_58 dim 1 : vector<1x256xf32>, i32 -> vector<1x256xf32>
    %c0_59 = arith.constant 0 : index
    %c0_60 = arith.constant 0 : index
    %121 = memref.load %arg1[%c0_59, %c0_60] : memref<2x8xf32, #tpu.memory_space<smem>>
    %122 = vector.broadcast %121 : f32 to vector<1x256xf32>
    %123 = arith.mulf %122, %96 : vector<1x256xf32>
    %c0_61 = arith.constant 0 : index
    %c1_62 = arith.constant 1 : index
    %124 = memref.load %arg1[%c0_61, %c1_62] : memref<2x8xf32, #tpu.memory_space<smem>>
    %125 = vector.broadcast %124 : f32 to vector<1x256xf32>
    %126 = arith.mulf %125, %115 : vector<1x256xf32>
    %127 = arith.addf %123, %126 : vector<1x256xf32>
    %c0_63 = arith.constant 0 : index
    %c2_64 = arith.constant 2 : index
    %128 = memref.load %arg1[%c0_63, %c2_64] : memref<2x8xf32, #tpu.memory_space<smem>>
    %129 = vector.broadcast %128 : f32 to vector<1x256xf32>
    %130 = arith.mulf %129, %116 : vector<1x256xf32>
    %131 = arith.addf %127, %130 : vector<1x256xf32>
    %c0_65 = arith.constant 0 : index
    %c3_66 = arith.constant 3 : index
    %132 = memref.load %arg1[%c0_65, %c3_66] : memref<2x8xf32, #tpu.memory_space<smem>>
    %133 = vector.broadcast %132 : f32 to vector<1x256xf32>
    %134 = arith.mulf %133, %117 : vector<1x256xf32>
    %135 = arith.addf %131, %134 : vector<1x256xf32>
    %c0_67 = arith.constant 0 : index
    %c4_68 = arith.constant 4 : index
    %136 = memref.load %arg1[%c0_67, %c4_68] : memref<2x8xf32, #tpu.memory_space<smem>>
    %137 = vector.broadcast %136 : f32 to vector<1x256xf32>
    %138 = arith.mulf %137, %114 : vector<1x256xf32>
    %139 = arith.addf %135, %138 : vector<1x256xf32>
    %c0_69 = arith.constant 0 : index
    %c5_70 = arith.constant 5 : index
    %140 = memref.load %arg1[%c0_69, %c5_70] : memref<2x8xf32, #tpu.memory_space<smem>>
    %141 = vector.broadcast %140 : f32 to vector<1x256xf32>
    %142 = arith.mulf %141, %118 : vector<1x256xf32>
    %143 = arith.addf %139, %142 : vector<1x256xf32>
    %c0_71 = arith.constant 0 : index
    %c6_72 = arith.constant 6 : index
    %144 = memref.load %arg1[%c0_71, %c6_72] : memref<2x8xf32, #tpu.memory_space<smem>>
    %145 = vector.broadcast %144 : f32 to vector<1x256xf32>
    %146 = arith.mulf %145, %119 : vector<1x256xf32>
    %147 = arith.addf %143, %146 : vector<1x256xf32>
    %c0_73 = arith.constant 0 : index
    %c7_74 = arith.constant 7 : index
    %148 = memref.load %arg1[%c0_73, %c7_74] : memref<2x8xf32, #tpu.memory_space<smem>>
    %149 = vector.broadcast %148 : f32 to vector<1x256xf32>
    %150 = arith.mulf %149, %120 : vector<1x256xf32>
    %151 = arith.addf %147, %150 : vector<1x256xf32>
    %c1_75 = arith.constant 1 : index
    %c0_76 = arith.constant 0 : index
    %152 = memref.load %arg1[%c1_75, %c0_76] : memref<2x8xf32, #tpu.memory_space<smem>>
    %153 = vector.broadcast %152 : f32 to vector<1x256xf32>
    %154 = arith.mulf %153, %96 : vector<1x256xf32>
    %c1_77 = arith.constant 1 : index
    %c1_78 = arith.constant 1 : index
    %155 = memref.load %arg1[%c1_77, %c1_78] : memref<2x8xf32, #tpu.memory_space<smem>>
    %156 = vector.broadcast %155 : f32 to vector<1x256xf32>
    %157 = arith.mulf %156, %115 : vector<1x256xf32>
    %158 = arith.addf %154, %157 : vector<1x256xf32>
    %c1_79 = arith.constant 1 : index
    %c2_80 = arith.constant 2 : index
    %159 = memref.load %arg1[%c1_79, %c2_80] : memref<2x8xf32, #tpu.memory_space<smem>>
    %160 = vector.broadcast %159 : f32 to vector<1x256xf32>
    %161 = arith.mulf %160, %116 : vector<1x256xf32>
    %162 = arith.addf %158, %161 : vector<1x256xf32>
    %c1_81 = arith.constant 1 : index
    %c3_82 = arith.constant 3 : index
    %163 = memref.load %arg1[%c1_81, %c3_82] : memref<2x8xf32, #tpu.memory_space<smem>>
    %164 = vector.broadcast %163 : f32 to vector<1x256xf32>
    %165 = arith.mulf %164, %117 : vector<1x256xf32>
    %166 = arith.addf %162, %165 : vector<1x256xf32>
    %c1_83 = arith.constant 1 : index
    %c4_84 = arith.constant 4 : index
    %167 = memref.load %arg1[%c1_83, %c4_84] : memref<2x8xf32, #tpu.memory_space<smem>>
    %168 = vector.broadcast %167 : f32 to vector<1x256xf32>
    %169 = arith.mulf %168, %114 : vector<1x256xf32>
    %170 = arith.addf %166, %169 : vector<1x256xf32>
    %c1_85 = arith.constant 1 : index
    %c5_86 = arith.constant 5 : index
    %171 = memref.load %arg1[%c1_85, %c5_86] : memref<2x8xf32, #tpu.memory_space<smem>>
    %172 = vector.broadcast %171 : f32 to vector<1x256xf32>
    %173 = arith.mulf %172, %118 : vector<1x256xf32>
    %174 = arith.addf %170, %173 : vector<1x256xf32>
    %c1_87 = arith.constant 1 : index
    %c6_88 = arith.constant 6 : index
    %175 = memref.load %arg1[%c1_87, %c6_88] : memref<2x8xf32, #tpu.memory_space<smem>>
    %176 = vector.broadcast %175 : f32 to vector<1x256xf32>
    %177 = arith.mulf %176, %119 : vector<1x256xf32>
    %178 = arith.addf %174, %177 : vector<1x256xf32>
    %c1_89 = arith.constant 1 : index
    %c7_90 = arith.constant 7 : index
    %179 = memref.load %arg1[%c1_89, %c7_90] : memref<2x8xf32, #tpu.memory_space<smem>>
    %180 = vector.broadcast %179 : f32 to vector<1x256xf32>
    %181 = arith.mulf %180, %120 : vector<1x256xf32>
    %182 = arith.addf %178, %181 : vector<1x256xf32>
    %c0_91 = arith.constant 0 : index
    %c0_92 = arith.constant 0 : index
    %183 = vector.load %arg4[%c0_91, %c0_92] : memref<1x256xf32, #tpu.memory_space<vmem>>, vector<1x256xf32>
    %184 = arith.mulf %151, %183 : vector<1x256xf32>
    %cst_93 = arith.constant dense<0.000000e+00> : vector<1xf32>
    %185 = vector.multi_reduction <add>, %184, %cst_93 [1] : vector<1x256xf32> to vector<1xf32>
    %186 = vector.shape_cast %185 : vector<1xf32> to vector<1x1xf32>
    %cst_94 = arith.constant 0.00444444455 : f32
    %187 = vector.broadcast %cst_94 : f32 to vector<1x1xf32>
    %188 = arith.mulf %186, %187 : vector<1x1xf32>
    %189 = vector.broadcast %188 : vector<1x1xf32> to vector<1x256xf32>
    %190 = arith.subf %184, %189 : vector<1x256xf32>
    %191 = arith.mulf %190, %183 : vector<1x256xf32>
    %192 = arith.mulf %191, %191 : vector<1x256xf32>
    %cst_95 = arith.constant dense<0.000000e+00> : vector<1xf32>
    %193 = vector.multi_reduction <add>, %192, %cst_95 [1] : vector<1x256xf32> to vector<1xf32>
    %194 = vector.shape_cast %193 : vector<1xf32> to vector<1x1xf32>
    %cst_96 = arith.constant 0.00444444455 : f32
    %195 = vector.broadcast %cst_96 : f32 to vector<1x1xf32>
    %196 = arith.mulf %194, %195 : vector<1x1xf32>
    %197 = vector.broadcast %188 : vector<1x1xf32> to vector<1x256xf32>
    %198 = arith.subf %184, %197 : vector<1x256xf32>
    %cst_97 = arith.constant 9.99999974E-6 : f32
    %199 = vector.broadcast %cst_97 : f32 to vector<1x1xf32>
    %200 = arith.addf %196, %199 : vector<1x1xf32>
    %201 = math.rsqrt %200 : vector<1x1xf32>
    %202 = vector.broadcast %201 : vector<1x1xf32> to vector<1x256xf32>
    %203 = arith.mulf %198, %202 : vector<1x256xf32>
    %cst_98 = arith.constant 0.000000e+00 : f32
    %204 = vector.broadcast %cst_98 : f32 to vector<1x256xf32>
    %205 = arith.maximumf %203, %204 : vector<1x256xf32>
    %206 = arith.mulf %182, %183 : vector<1x256xf32>
    %cst_99 = arith.constant dense<0.000000e+00> : vector<1xf32>
    %207 = vector.multi_reduction <add>, %206, %cst_99 [1] : vector<1x256xf32> to vector<1xf32>
    %208 = vector.shape_cast %207 : vector<1xf32> to vector<1x1xf32>
    %cst_100 = arith.constant 0.00444444455 : f32
    %209 = vector.broadcast %cst_100 : f32 to vector<1x1xf32>
    %210 = arith.mulf %208, %209 : vector<1x1xf32>
    %211 = vector.broadcast %210 : vector<1x1xf32> to vector<1x256xf32>
    %212 = arith.subf %206, %211 : vector<1x256xf32>
    %213 = arith.mulf %212, %183 : vector<1x256xf32>
    %214 = arith.mulf %213, %213 : vector<1x256xf32>
    %cst_101 = arith.constant dense<0.000000e+00> : vector<1xf32>
    %215 = vector.multi_reduction <add>, %214, %cst_101 [1] : vector<1x256xf32> to vector<1xf32>
    %216 = vector.shape_cast %215 : vector<1xf32> to vector<1x1xf32>
    %cst_102 = arith.constant 0.00444444455 : f32
    %217 = vector.broadcast %cst_102 : f32 to vector<1x1xf32>
    %218 = arith.mulf %216, %217 : vector<1x1xf32>
    %219 = vector.broadcast %210 : vector<1x1xf32> to vector<1x256xf32>
    %220 = arith.subf %206, %219 : vector<1x256xf32>
    %cst_103 = arith.constant 9.99999974E-6 : f32
    %221 = vector.broadcast %cst_103 : f32 to vector<1x1xf32>
    %222 = arith.addf %218, %221 : vector<1x1xf32>
    %223 = math.rsqrt %222 : vector<1x1xf32>
    %224 = vector.broadcast %223 : vector<1x1xf32> to vector<1x256xf32>
    %225 = arith.mulf %220, %224 : vector<1x256xf32>
    %cst_104 = arith.constant 0.000000e+00 : f32
    %226 = vector.broadcast %cst_104 : f32 to vector<1x256xf32>
    %227 = arith.maximumf %225, %226 : vector<1x256xf32>
    %228 = tpu.concatenate %205, %227 in 1 : vector<1x256xf32>, vector<1x256xf32> -> vector<1x512xf32>
    %229 = arith.truncf %228 : vector<1x512xf32> to vector<1x512xbf16>
    tpu.wait_dma2 semaphore(%arg12 : memref<!tpu.dma_semaphore, #tpu.memory_space<semaphore_mem>>) src(%arg9 : memref<512x256xbf16, #tpu.memory_space<any>>) dst(%arg11 : memref<512x256xbf16, #tpu.memory_space<vmem>>)
    %c0_105 = arith.constant 0 : index
    %c0_106 = arith.constant 0 : index
    %230 = vector.load %arg11[%c0_105, %c0_106] : memref<512x256xbf16, #tpu.memory_space<vmem>>, vector<512x256xbf16>
    %cst_107 = arith.constant dense<0.000000e+00> : vector<1x256xf32>
    %231 = tpu.matmul %229, %230, %cst_107 {dimension_numbers = #tpu.dot_dimension_numbers<[1], [0], [0], [1], [0, 0, 1, 1], [], []>} : vector<1x512xbf16>, vector<512x256xbf16>, vector<1x256xf32> -> vector<1x256xf32>
    %c0_108 = arith.constant 0 : index
    %c0_109 = arith.constant 0 : index
    %232 = memref.load %arg2[%c0_108, %c0_109] : memref<1x2xf32, #tpu.memory_space<smem>>
    %c0_110 = arith.constant 0 : index
    %c0_111 = arith.constant 0 : index
    %233 = vector.load %arg5[%c0_110, %c0_111] : memref<2x256xf32, #tpu.memory_space<vmem>>, vector<1x256xf32>
    %234 = vector.broadcast %232 : f32 to vector<1x256xf32>
    %235 = arith.mulf %234, %233 : vector<1x256xf32>
    %236 = arith.addf %231, %235 : vector<1x256xf32>
    %c0_112 = arith.constant 0 : index
    %c1_113 = arith.constant 1 : index
    %237 = memref.load %arg2[%c0_112, %c1_113] : memref<1x2xf32, #tpu.memory_space<smem>>
    %c1_114 = arith.constant 1 : index
    %c0_115 = arith.constant 0 : index
    %238 = vector.load %arg5[%c1_114, %c0_115] : memref<2x256xf32, #tpu.memory_space<vmem>>, vector<1x256xf32>
    %239 = vector.broadcast %237 : f32 to vector<1x256xf32>
    %240 = arith.mulf %239, %238 : vector<1x256xf32>
    %241 = arith.addf %236, %240 : vector<1x256xf32>
    %c0_116 = arith.constant 0 : index
    %c0_117 = arith.constant 0 : index
    %242 = vector.load %arg6[%c0_116, %c0_117] : memref<1x256xf32, #tpu.memory_space<vmem>>, vector<1x256xf32>
    %243 = arith.addf %241, %242 : vector<1x256xf32>
    %cst_118 = arith.constant 0.000000e+00 : f32
    %244 = vector.broadcast %cst_118 : f32 to vector<1x256xf32>
    %245 = arith.maximumf %243, %244 : vector<1x256xf32>
    %c0_119 = arith.constant 0 : index
    %c0_120 = arith.constant 0 : index
    %246 = vector.load %arg7[%c0_119, %c0_120] : memref<4x256xf32, #tpu.memory_space<vmem>>, vector<4x256xf32>
    %247 = vector.extract_strided_slice %246 {offsets = [0, 0], sizes = [1, 256], strides = [1, 1]} : vector<4x256xf32> to vector<1x256xf32>
    %248 = arith.mulf %245, %247 : vector<1x256xf32>
    %cst_121 = arith.constant dense<0.000000e+00> : vector<1xf32>
    %249 = vector.multi_reduction <add>, %248, %cst_121 [1] : vector<1x256xf32> to vector<1xf32>
    %250 = vector.shape_cast %249 : vector<1xf32> to vector<1x1xf32>
    %251 = vector.extract_strided_slice %246 {offsets = [1, 0], sizes = [1, 256], strides = [1, 1]} : vector<4x256xf32> to vector<1x256xf32>
    %252 = arith.mulf %245, %251 : vector<1x256xf32>
    %cst_122 = arith.constant dense<0.000000e+00> : vector<1xf32>
    %253 = vector.multi_reduction <add>, %252, %cst_122 [1] : vector<1x256xf32> to vector<1xf32>
    %254 = vector.shape_cast %253 : vector<1xf32> to vector<1x1xf32>
    %255 = vector.extract_strided_slice %246 {offsets = [2, 0], sizes = [1, 256], strides = [1, 1]} : vector<4x256xf32> to vector<1x256xf32>
    %256 = arith.mulf %245, %255 : vector<1x256xf32>
    %cst_123 = arith.constant dense<0.000000e+00> : vector<1xf32>
    %257 = vector.multi_reduction <add>, %256, %cst_123 [1] : vector<1x256xf32> to vector<1xf32>
    %258 = vector.shape_cast %257 : vector<1xf32> to vector<1x1xf32>
    %259 = vector.extract_strided_slice %246 {offsets = [3, 0], sizes = [1, 256], strides = [1, 1]} : vector<4x256xf32> to vector<1x256xf32>
    %260 = arith.mulf %245, %259 : vector<1x256xf32>
    %cst_124 = arith.constant dense<0.000000e+00> : vector<1xf32>
    %261 = vector.multi_reduction <add>, %260, %cst_124 [1] : vector<1x256xf32> to vector<1xf32>
    %262 = vector.shape_cast %261 : vector<1xf32> to vector<1x1xf32>
    %263 = tpu.concatenate %250, %254, %258, %262 in 1 : vector<1x1xf32>, vector<1x1xf32>, vector<1x1xf32>, vector<1x1xf32> -> vector<1x4xf32>
    %c0_125 = arith.constant 0 : index
    %c0_126 = arith.constant 0 : index
    %264 = vector.load %arg8[%c0_125, %c0_126] : memref<1x4xf32, #tpu.memory_space<vmem>>, vector<1x4xf32>
    %265 = arith.addf %263, %264 : vector<1x4xf32>
    %cst_127 = arith.constant dense<0xFF800000> : vector<1xf32>
    %266 = vector.multi_reduction <maximumf>, %265, %cst_127 [1] : vector<1x4xf32> to vector<1xf32>
    %267 = vector.shape_cast %266 : vector<1xf32> to vector<1x1xf32>
    %268 = vector.broadcast %267 : vector<1x1xf32> to vector<1x4xf32>
    %269 = arith.subf %265, %268 : vector<1x4xf32>
    %270 = math.exp %269 : vector<1x4xf32>
    %cst_128 = arith.constant dense<0.000000e+00> : vector<1xf32>
    %271 = vector.multi_reduction <add>, %270, %cst_128 [1] : vector<1x4xf32> to vector<1xf32>
    %272 = vector.shape_cast %271 : vector<1xf32> to vector<1x1xf32>
    %273 = vector.broadcast %272 : vector<1x1xf32> to vector<1x4xf32>
    %274 = arith.divf %270, %273 : vector<1x4xf32>
    %c0_129 = arith.constant 0 : index
    %c0_130 = arith.constant 0 : index
    %275 = vector.load %arg10[%c0_129, %c0_130] : memref<1x4xf32, #tpu.memory_space<vmem>>, vector<1x4xf32>
    tpu.vector_store %arg10[%c0_129, %c0_130], %274 {strides = array<i32>} : memref<1x4xf32, #tpu.memory_space<vmem>>, vector<1x4xf32>,
    return
  }
}

</mosaic_0001>

<llo_original>
// kernel: dqn_forward.1
$region0: #{dqn_forward.1}
  #allocation0 [shape = 'u32[]', space=smem, size = 0x4, offset = 0x4, fixed_abs, tag = 'smem constant byte address 0x4 - core index']
  #allocation1 [shape = 'u32[72,128]{1,0:T(1,128)}', space=vmem, size = 0x9000, scoped, tag = 'internal scratch']
  #allocation2 [shape = 'bf16[512,256]{1,0:T(8,128)(2,1)}', space=vmem, size = 0x40000, scoped, tag = 'scratch operand']
  #allocation3 [shape = 's32[1]{0}', space=sflag, size = 0x4, scoped, tag = 'scratch operand']
  #allocation11 [shape = 's32[]', space=sflag, size = 0x4, offset = 0, fixed_abs, tag = 'sflag constant byte address 0x0 - dummy sync flag']
  %s0 = inlined_call_operand.vmem [shape: f32[2,9], index: 0, kind: input, shape index: {}]
  %s1 = inlined_call_operand.vmem [shape: f32[2,8], index: 1, kind: input, shape index: {}]
  %s2 = inlined_call_operand.vmem [shape: f32[1,2], index: 2, kind: input, shape index: {}]
  %s3 = inlined_call_operand.vmem [shape: f32[9,256], index: 3, kind: input, shape index: {}]
  %s4 = inlined_call_operand.vmem [shape: f32[1,256], index: 4, kind: input, shape index: {}]
  %s5 = inlined_call_operand.vmem [shape: f32[2,256], index: 5, kind: input, shape index: {}]
  %s6 = inlined_call_operand.vmem [shape: f32[1,256], index: 6, kind: input, shape index: {}]
  %s7 = inlined_call_operand.vmem [shape: f32[4,256], index: 7, kind: input, shape index: {}]
  %s8 = inlined_call_operand.vmem [shape: f32[1,4], index: 8, kind: input, shape index: {}]
  %s9 = inlined_call_operand.vmem [shape: bf16[512,256], index: 9, kind: input, shape index: {}]
  %s10 = inlined_call_operand.hbm [shape: f32[1,4], index: 10, kind: output, shape index: {}]
  %s11 = sld [smem:[#allocation0]]
  $region77: #{dqn_forward.1} parent=0
    _
  %s13 = ssub.s32 1, %s11
  %s14 = scalar_select 0, %s13, %s11
  $region1: #{dqn_forward.1} parent=0
    #allocation4 [shape = 'u8[1024]{0}', space=smem, size = 0x400, scoped, tag = 'input window, operand 0, single buffered']
    #allocation5 [shape = 's32[1]{0}', space=sflag, size = 0x4, scoped, tag = 'scoped memory for dqn_forward.1']
    #allocation6 [shape = 's32[1]{0}', space=sflag, size = 0x4, scoped, tag = 'scoped memory for dqn_forward.1']
    #allocation7 [shape = 'u8[1024]{0}', space=smem, size = 0x400, scoped, tag = 'input window, operand 1, single buffered']
    #allocation8 [shape = 's32[1]{0}', space=sflag, size = 0x4, scoped, tag = 'scoped memory for dqn_forward.1']
    #allocation9 [shape = 'u8[512]{0}', space=smem, size = 0x200, scoped, tag = 'input window, operand 2, single buffered']
    #allocation10 [shape = 'u8[512]{0}', space=vmem, size = 0x400, scoped, tag = 'output window, operand 0, single buffered']
    %15 = vsyncpa [#allocation6], 0
    %16 = vsyncpa [#allocation8], 0
    %17 = vsyncpa [#allocation5], 0
    // Predicated region
    $region2: #{dqn_forward.1} parent=1 // pred_check
      _
    $region3: #{dqn_forward.1} parent=1 // pred_check_branch
      %19 = sbr.rel (0) target = $region5
    $region4: #{dqn_forward.1} parent=1 // pred_region
      %21 = vsyncadd [#allocation6], 0
      %s23 = sshll.u32 %s0, 4
      %s24 = int_to_ptr.vmem [resolvable:$true] %s23
      %26 = dma.vmem_to_smem %s24, 32, [#allocation4], [#allocation6]
    $region5: #{dqn_forward.1} parent=1 // pred_fallthru
      _
    // Predicated region
    $region6: #{dqn_forward.1} parent=1 // pred_check
      _
    $region7: #{dqn_forward.1} parent=1 // pred_check_branch
      %28 = sbr.rel (0) target = $region9
    $region8: #{dqn_forward.1} parent=1 // pred_region
      %30 = vsyncadd [#allocation8], 0
      %s32 = sshll.u32 %s1, 4
      %s33 = int_to_ptr.vmem [resolvable:$true] %s32
      %35 = dma.vmem_to_smem %s33, 32, [#allocation7], [#allocation8]
    $region9: #{dqn_forward.1} parent=1 // pred_fallthru
      _
    // Predicated region
    $region10: #{dqn_forward.1} parent=1 // pred_check
      _
    $region11: #{dqn_forward.1} parent=1 // pred_check_branch
      %37 = sbr.rel (0) target = $region13
    $region12: #{dqn_forward.1} parent=1 // pred_region
      %39 = vsyncadd [#allocation8], 0
      %s41 = sshll.u32 %s2, 4
      %s42 = int_to_ptr.vmem [resolvable:$true] %s41
      %44 = dma.vmem_to_smem %s42, 16, [#allocation9], [#allocation8]
    $region13: #{dqn_forward.1} parent=1 // pred_fallthru
      _
    // Predicated region
    $region14: #{dqn_forward.1} parent=1 // pred_check
      _
    $region15: #{dqn_forward.1} parent=1 // pred_check_branch
      %46 = sbr.rel (0) target = $region17
    $region16: #{dqn_forward.1} parent=1 // pred_region
      _
    $region17: #{dqn_forward.1} parent=1 // pred_fallthru
      _
    // Predicated region
    $region18: #{dqn_forward.1} parent=1 // pred_check
      _
    $region19: #{dqn_forward.1} parent=1 // pred_check_branch
      %48 = sbr.rel (0) target = $region21
    $region20: #{dqn_forward.1} parent=1 // pred_region
      _
    $region21: #{dqn_forward.1} parent=1 // pred_fallthru
      _
    // Predicated region
    $region22: #{dqn_forward.1} parent=1 // pred_check
      _
    $region23: #{dqn_forward.1} parent=1 // pred_check_branch
      %50 = sbr.rel (0) target = $region25
    $region24: #{dqn_forward.1} parent=1 // pred_region
      _
    $region25: #{dqn_forward.1} parent=1 // pred_fallthru
      _
    // Predicated region
    $region26: #{dqn_forward.1} parent=1 // pred_check
      _
    $region27: #{dqn_forward.1} parent=1 // pred_check_branch
      %52 = sbr.rel (0) target = $region29
    $region28: #{dqn_forward.1} parent=1 // pred_region
      _
    $region29: #{dqn_forward.1} parent=1 // pred_fallthru
      _
    // Predicated region
    $region30: #{dqn_forward.1} parent=1 // pred_check
      _
    $region31: #{dqn_forward.1} parent=1 // pred_check_branch
      %54 = sbr.rel (0) target = $region33
    $region32: #{dqn_forward.1} parent=1 // pred_region
      _
    $region33: #{dqn_forward.1} parent=1 // pred_fallthru
      _
    // Predicated region
    $region34: #{dqn_forward.1} parent=1 // pred_check
      _
    $region35: #{dqn_forward.1} parent=1 // pred_check_branch
      %56 = sbr.rel (0) target = $region37
    $region36: #{dqn_forward.1} parent=1 // pred_region
      _
    $region37: #{dqn_forward.1} parent=1 // pred_fallthru
      _
    // Predicated region
    $region38: #{dqn_forward.1} parent=1 // pred_check
      _
    $region39: #{dqn_forward.1} parent=1 // pred_check_branch
      %58 = sbr.rel (0) target = $region41
    $region40: #{dqn_forward.1} parent=1 // pred_region
      %60 = dma.done [#allocation6], 32
    $region41: #{dqn_forward.1} parent=1 // pred_fallthru
      _
    // Predicated region
    $region42: #{dqn_forward.1} parent=1 // pred_check
      _
    $region43: #{dqn_forward.1} parent=1 // pred_check_branch
      %62 = sbr.rel (0) target = $region45
    $region44: #{dqn_forward.1} parent=1 // pred_region
      %64 = dma.done [#allocation8], 32
    $region45: #{dqn_forward.1} parent=1 // pred_fallthru
      _
    // Predicated region
    $region46: #{dqn_forward.1} parent=1 // pred_check
      _
    $region47: #{dqn_forward.1} parent=1 // pred_check_branch
      %66 = sbr.rel (0) target = $region49
    $region48: #{dqn_forward.1} parent=1 // pred_region
      %68 = dma.done [#allocation8], 16
    $region49: #{dqn_forward.1} parent=1 // pred_fallthru
      _
    %69 = sfence
    // Predicated region
    $region50: #{dqn_forward.1} parent=1 // pred_check
      _
    $region51: #{dqn_forward.1} parent=1 // pred_check_branch
      %71 = sbr.rel (0) target = $region53
    $region52: #{dqn_forward.1} parent=1 // pred_region
      loop: start=0, step=1, limit=1
      $region54: #{dqn_forward.1} parent=52 // loop_pre_header
        _
      $region55: #{dqn_forward.1} parent=52 // loop_header
        %s73 = sphi 0, %s77
        %p74 = scmp.ge.s32.totalorder %s73, 1
        %s78 = sphi %s9, %s9
        %s79 = sphi [#allocation2], [#allocation2]
      $region56: #{dqn_forward.1} parent=52 // loop_header_branch
        %76 = sbr.rel (%p74) target = $region60
      $region57: #{dqn_forward.1} parent=52 // loop_body
        %v80 = vld [vmem:[%s78] sm:$0xff]
        %81 = vst [vmem:[%s79] sm:$0xff] %v80
        %v82 = vld [vmem:[%s78 + $0x8] sm:$0xff]
        %83 = vst [vmem:[%s79 + $0x8] sm:$0xff] %v82
        %v84 = vld [vmem:[%s78 + $0x10] sm:$0xff]
        %85 = vst [vmem:[%s79 + $0x10] sm:$0xff] %v84
        %v86 = vld [vmem:[%s78 + $0x18] sm:$0xff]
        %87 = vst [vmem:[%s79 + $0x18] sm:$0xff] %v86
        %v88 = vld [vmem:[%s78 + $0x20] sm:$0xff]
        %89 = vst [vmem:[%s79 + $0x20] sm:$0xff] %v88
        %v90 = vld [vmem:[%s78 + $0x28] sm:$0xff]
        %91 = vst [vmem:[%s79 + $0x28] sm:$0xff] %v90
        %v92 = vld [vmem:[%s78 + $0x30] sm:$0xff]
        %93 = vst [vmem:[%s79 + $0x30] sm:$0xff] %v92
        %v94 = vld [vmem:[%s78 + $0x38] sm:$0xff]
        %95 = vst [vmem:[%s79 + $0x38] sm:$0xff] %v94
        %v96 = vld [vmem:[%s78 + $0x40] sm:$0xff]
        %97 = vst [vmem:[%s79 + $0x40] sm:$0xff] %v96
        %v98 = vld [vmem:[%s78 + $0x48] sm:$0xff]
        %99 = vst [vmem:[%s79 + $0x48] sm:$0xff] %v98
        %v100 = vld [vmem:[%s78 + $0x50] sm:$0xff]
        %101 = vst [vmem:[%s79 + $0x50] sm:$0xff] %v100
        %v102 = vld [vmem:[%s78 + $0x58] sm:$0xff]
        %103 = vst [vmem:[%s79 + $0x58] sm:$0xff] %v102
        %v104 = vld [vmem:[%s78 + $0x60] sm:$0xff]
        %105 = vst [vmem:[%s79 + $0x60] sm:$0xff] %v104
        %v106 = vld [vmem:[%s78 + $0x68] sm:$0xff]
        %107 = vst [vmem:[%s79 + $0x68] sm:$0xff] %v106
        %v108 = vld [vmem:[%s78 + $0x70] sm:$0xff]
        %109 = vst [vmem:[%s79 + $0x70] sm:$0xff] %v108
        %v110 = vld [vmem:[%s78 + $0x78] sm:$0xff]
        %111 = vst [vmem:[%s79 + $0x78] sm:$0xff] %v110
        %v112 = vld [vmem:[%s78 + $0x80] sm:$0xff]
        %113 = vst [vmem:[%s79 + $0x80] sm:$0xff] %v112
        %v114 = vld [vmem:[%s78 + $0x88] sm:$0xff]
        %115 = vst [vmem:[%s79 + $0x88] sm:$0xff] %v114
        %v116 = vld [vmem:[%s78 + $0x90] sm:$0xff]
        %117 = vst [vmem:[%s79 + $0x90] sm:$0xff] %v116
        %v118 = vld [vmem:[%s78 + $0x98] sm:$0xff]
        %119 = vst [vmem:[%s79 + $0x98] sm:$0xff] %v118
        %v120 = vld [vmem:[%s78 + $0xa0] sm:$0xff]
        %121 = vst [vmem:[%s79 + $0xa0] sm:$0xff] %v120
        %v122 = vld [vmem:[%s78 + $0xa8] sm:$0xff]
        %123 = vst [vmem:[%s79 + $0xa8] sm:$0xff] %v122
        %v124 = vld [vmem:[%s78 + $0xb0] sm:$0xff]
        %125 = vst [vmem:[%s79 + $0xb0] sm:$0xff] %v124
        %v126 = vld [vmem:[%s78 + $0xb8] sm:$0xff]
        %127 = vst [vmem:[%s79 + $0xb8] sm:$0xff] %v126
        %v128 = vld [vmem:[%s78 + $0xc0] sm:$0xff]
        %129 = vst [vmem:[%s79 + $0xc0] sm:$0xff] %v128
        %v130 = vld [vmem:[%s78 + $0xc8] sm:$0xff]
        %131 = vst [vmem:[%s79 + $0xc8] sm:$0xff] %v130
        %v132 = vld [vmem:[%s78 + $0xd0] sm:$0xff]
        %133 = vst [vmem:[%s79 + $0xd0] sm:$0xff] %v132
        %v134 = vld [vmem:[%s78 + $0xd8] sm:$0xff]
        %135 = vst [vmem:[%s79 + $0xd8] sm:$0xff] %v134
        %v136 = vld [vmem:[%s78 + $0xe0] sm:$0xff]
        %137 = vst [vmem:[%s79 + $0xe0] sm:$0xff] %v136
        %v138 = vld [vmem:[%s78 + $0xe8] sm:$0xff]
        %139 = vst [vmem:[%s79 + $0xe8] sm:$0xff] %v138
        %v140 = vld [vmem:[%s78 + $0xf0] sm:$0xff]
        %141 = vst [vmem:[%s79 + $0xf0] sm:$0xff] %v140
        %v142 = vld [vmem:[%s78 + $0xf8] sm:$0xff]
        %143 = vst [vmem:[%s79 + $0xf8] sm:$0xff] %v142
        %v144 = vld [vmem:[%s78 + $0x100] sm:$0xff]
        %145 = vst [vmem:[%s79 + $0x100] sm:$0xff] %v144
        %v146 = vld [vmem:[%s78 + $0x108] sm:$0xff]
        %147 = vst [vmem:[%s79 + $0x108] sm:$0xff] %v146
        %v148 = vld [vmem:[%s78 + $0x110] sm:$0xff]
        %149 = vst [vmem:[%s79 + $0x110] sm:$0xff] %v148
        %v150 = vld [vmem:[%s78 + $0x118] sm:$0xff]
        %151 = vst [vmem:[%s79 + $0x118] sm:$0xff] %v150
        %v152 = vld [vmem:[%s78 + $0x120] sm:$0xff]
        %153 = vst [vmem:[%s79 + $0x120] sm:$0xff] %v152
        %v154 = vld [vmem:[%s78 + $0x128] sm:$0xff]
        %155 = vst [vmem:[%s79 + $0x128] sm:$0xff] %v154
        %v156 = vld [vmem:[%s78 + $0x130] sm:$0xff]
        %157 = vst [vmem:[%s79 + $0x130] sm:$0xff] %v156
        %v158 = vld [vmem:[%s78 + $0x138] sm:$0xff]
        %159 = vst [vmem:[%s79 + $0x138] sm:$0xff] %v158
        %v160 = vld [vmem:[%s78 + $0x140] sm:$0xff]
        %161 = vst [vmem:[%s79 + $0x140] sm:$0xff] %v160
        %v162 = vld [vmem:[%s78 + $0x148] sm:$0xff]
        %163 = vst [vmem:[%s79 + $0x148] sm:$0xff] %v162
        %v164 = vld [vmem:[%s78 + $0x150] sm:$0xff]
        %165 = vst [vmem:[%s79 + $0x150] sm:$0xff] %v164
        %v166 = vld [vmem:[%s78 + $0x158] sm:$0xff]
        %167 = vst [vmem:[%s79 + $0x158] sm:$0xff] %v166
        %v168 = vld [vmem:[%s78 + $0x160] sm:$0xff]
        %169 = vst [vmem:[%s79 + $0x160] sm:$0xff] %v168
        %v170 = vld [vmem:[%s78 + $0x168] sm:$0xff]
        %171 = vst [vmem:[%s79 + $0x168] sm:$0xff] %v170
        %v172 = vld [vmem:[%s78 + $0x170] sm:$0xff]
        %173 = vst [vmem:[%s79 + $0x170] sm:$0xff] %v172
        %v174 = vld [vmem:[%s78 + $0x178] sm:$0xff]
        %175 = vst [vmem:[%s79 + $0x178] sm:$0xff] %v174
        %v176 = vld [vmem:[%s78 + $0x180] sm:$0xff]
        %177 = vst [vmem:[%s79 + $0x180] sm:$0xff] %v176
        %v178 = vld [vmem:[%s78 + $0x188] sm:$0xff]
        %179 = vst [vmem:[%s79 + $0x188] sm:$0xff] %v178
        %v180 = vld [vmem:[%s78 + $0x190] sm:$0xff]
        %181 = vst [vmem:[%s79 + $0x190] sm:$0xff] %v180
        %v182 = vld [vmem:[%s78 + $0x198] sm:$0xff]
        %183 = vst [vmem:[%s79 + $0x198] sm:$0xff] %v182
        %v184 = vld [vmem:[%s78 + $0x1a0] sm:$0xff]
        %185 = vst [vmem:[%s79 + $0x1a0] sm:$0xff] %v184
        %v186 = vld [vmem:[%s78 + $0x1a8] sm:$0xff]
        %187 = vst [vmem:[%s79 + $0x1a8] sm:$0xff] %v186
        %v188 = vld [vmem:[%s78 + $0x1b0] sm:$0xff]
        %189 = vst [vmem:[%s79 + $0x1b0] sm:$0xff] %v188
        %v190 = vld [vmem:[%s78 + $0x1b8] sm:$0xff]
        %191 = vst [vmem:[%s79 + $0x1b8] sm:$0xff] %v190
        %v192 = vld [vmem:[%s78 + $0x1c0] sm:$0xff]
        %193 = vst [vmem:[%s79 + $0x1c0] sm:$0xff] %v192
        %v194 = vld [vmem:[%s78 + $0x1c8] sm:$0xff]
        %195 = vst [vmem:[%s79 + $0x1c8] sm:$0xff] %v194
        %v196 = vld [vmem:[%s78 + $0x1d0] sm:$0xff]
        %197 = vst [vmem:[%s79 + $0x1d0] sm:$0xff] %v196
        %v198 = vld [vmem:[%s78 + $0x1d8] sm:$0xff]
        %199 = vst [vmem:[%s79 + $0x1d8] sm:$0xff] %v198
        %v200 = vld [vmem:[%s78 + $0x1e0] sm:$0xff]
        %201 = vst [vmem:[%s79 + $0x1e0] sm:$0xff] %v200
        %v202 = vld [vmem:[%s78 + $0x1e8] sm:$0xff]
        %203 = vst [vmem:[%s79 + $0x1e8] sm:$0xff] %v202
        %v204 = vld [vmem:[%s78 + $0x1f0] sm:$0xff]
        %205 = vst [vmem:[%s79 + $0x1f0] sm:$0xff] %v204
        %v206 = vld [vmem:[%s78 + $0x1f8] sm:$0xff]
        %207 = vst [vmem:[%s79 + $0x1f8] sm:$0xff] %v206
      $region58: #{dqn_forward.1} parent=52 // loop_footer
        %s77 = sadd.s32 1, %s73
      $region59: #{dqn_forward.1} parent=52 // loop_footer_branch
        %72 = sbr.rel target = $region55
      $region60: #{dqn_forward.1} parent=52 // loop_exit
        _
    $region53: #{dqn_forward.1} parent=1 // pred_fallthru
      _
    // Predicated region
    $region61: #{dqn_forward.1} parent=1 // pred_check
      _
    $region62: #{dqn_forward.1} parent=1 // pred_check_branch
      %209 = sbr.rel target = $region64
    $region63: #{dqn_forward.1} parent=1 // pred_region
      _
    $region64: #{dqn_forward.1} parent=1 // pred_fallthru
      _
    // Predicated region
    $region65: #{dqn_forward.1} parent=1 // pred_check
      _
    $region66: #{dqn_forward.1} parent=1 // pred_check_branch
      %212 = sbr.rel (0) target = $region68
    $region67: #{dqn_forward.1} parent=1 // pred_region
      %213 = vsyncadd [#allocation3], 8192
    $region68: #{dqn_forward.1} parent=1 // pred_fallthru
      _
    %v214 = vld [vmem:[%s3] ss:$8 sm:$0x3]
    %s215 = scalar_lea.vmem %s3, 1
    %v216 = vld [vmem:[%s215] ss:$8 sm:$0x3]
    %s217 = scalar_lea.vmem %s3, 2
    %v218 = vld [vmem:[%s217] ss:$8 sm:$0x3]
    %s219 = scalar_lea.vmem %s3, 3
    %v220 = vld [vmem:[%s219] ss:$8 sm:$0x3]
    %s221 = scalar_lea.vmem %s3, 4
    %v222 = vld [vmem:[%s221] ss:$8 sm:$0x3]
    %s223 = scalar_lea.vmem %s3, 5
    %v224 = vld [vmem:[%s223] ss:$8 sm:$0x3]
    %s225 = scalar_lea.vmem %s3, 6
    %v226 = vld [vmem:[%s225] ss:$8 sm:$0x3]
    %s227 = scalar_lea.vmem %s3, 7
    %v228 = vld [vmem:[%s227] ss:$8 sm:$0x3]
    %s229 = scalar_lea.vmem %s3, 16
    %v230 = vld [vmem:[%s229] ss:$8 sm:$0x3]
    %s231 = sld [smem:[#allocation4]]
    %v232 = vstv %s231
    %v233 = vmul.f32 %v232, %v214
    %s234 = sld [smem:[#allocation4 + $0x1]]
    %v235 = vstv %s234
    %v236 = vmul.f32 %v235, %v216
    %v237 = vadd.f32 %v233, %v236
    %s238 = sld [smem:[#allocation4 + $0x2]]
    %v239 = vstv %s238
    %v240 = vmul.f32 %v239, %v218
    %v241 = vadd.f32 %v237, %v240
    %s242 = sld [smem:[#allocation4 + $0x3]]
    %v243 = vstv %s242
    %v244 = vmul.f32 %v243, %v220
    %v245 = vadd.f32 %v241, %v244
    %s246 = sld [smem:[#allocation4 + $0x4]]
    %v247 = vstv %s246
    %v248 = vmul.f32 %v247, %v222
    %v249 = vadd.f32 %v245, %v248
    %s250 = sld [smem:[#allocation4 + $0x5]]
    %v251 = vstv %s250
    %v252 = vmul.f32 %v251, %v224
    %v253 = vadd.f32 %v249, %v252
    %s254 = sld [smem:[#allocation4 + $0x6]]
    %v255 = vstv %s254
    %v256 = vmul.f32 %v255, %v226
    %v257 = vadd.f32 %v253, %v256
    %s258 = sld [smem:[#allocation4 + $0x7]]
    %v259 = vstv %s258
    %v260 = vmul.f32 %v259, %v228
    %v261 = vadd.f32 %v257, %v260
    %s262 = sld [smem:[#allocation4 + $0x8]]
    %v263 = vstv %s262
    %v264 = vmul.f32 %v263, %v230
    %v265 = vadd.f32 %v261, %v264
    %s266 = sld [smem:[#allocation4 + $0x80]]
    %v267 = vstv %s266
    %v268 = vmul.f32 %v267, %v214
    %s269 = sld [smem:[#allocation4 + $0x81]]
    %v270 = vstv %s269
    %v271 = vmul.f32 %v270, %v216
    %v272 = vadd.f32 %v268, %v271
    %s273 = sld [smem:[#allocation4 + $0x82]]
    %v274 = vstv %s273
    %v275 = vmul.f32 %v274, %v218
    %v276 = vadd.f32 %v272, %v275
    %s277 = sld [smem:[#allocation4 + $0x83]]
    %v278 = vstv %s277
    %v279 = vmul.f32 %v278, %v220
    %v280 = vadd.f32 %v276, %v279
    %s281 = sld [smem:[#allocation4 + $0x84]]
    %v282 = vstv %s281
    %v283 = vmul.f32 %v282, %v222
    %v284 = vadd.f32 %v280, %v283
    %s285 = sld [smem:[#allocation4 + $0x85]]
    %v286 = vstv %s285
    %v287 = vmul.f32 %v286, %v224
    %v288 = vadd.f32 %v284, %v287
    %s289 = sld [smem:[#allocation4 + $0x86]]
    %v290 = vstv %s289
    %v291 = vmul.f32 %v290, %v226
    %v292 = vadd.f32 %v288, %v291
    %s293 = sld [smem:[#allocation4 + $0x87]]
    %v294 = vstv %s293
    %v295 = vmul.f32 %v294, %v228
    %v296 = vadd.f32 %v292, %v295
    %s297 = sld [smem:[#allocation4 + $0x88]]
    %v298 = vstv %s297
    %v299 = vmul.f32 %v298, %v230
    %v300 = vadd.f32 %v296, %v299
    %v302 = vperm.slane %v265, 0
    %v303 = vperm.slane %v265, 1
    %vm306 = vcmask 1040384
    %v307 = vsel %vm306, %v302, 0.0
    %v308 = vsel %vm306, %v303, 0.0
    %v309 = vadd.f32 %v307, %v308
    %310 = vadd.xlane.f32.xlu0 %v309
    %v311 = vpop.xlane.xlu0 %310
    %v312 = vrcp.pop 256.0
    %v313 = vmul.f32 256.0, %v312
    %v314 = vsub.f32 1.0, %v313
    %v315 = vmul.f32 %v312, %v314
    %v316 = vadd.f32 %v312, %v315
    %vm317 = vweird.f32 %v312
    %v318 = vsel %vm317, %v312, %v316
    %v319 = vmul.f32 %v311, %v318
    %v321 = vperm.slane %v319, 0
    %v323 = vsub.f32 %v265, %v321
    %v324 = vmul.f32 %v323, %v323
    %v326 = vperm.slane %v324, 0
    %v327 = vperm.slane %v324, 1
    %v330 = vsel %vm306, %v326, 0.0
    %v331 = vsel %vm306, %v327, 0.0
    %v332 = vadd.f32 %v330, %v331
    %333 = vadd.xlane.f32.xlu0 %v332
    %v334 = vpop.xlane.xlu0 %333
    %v335 = vmul.f32 %v334, %v318
    %v336 = vadd.f32 %v335, 1e-05
    %v337 = vrsqrt.pop %v336
    %v338 = vmul.f32 %v337, %v336
    %v339 = vmul.f32 %v338, %v337
    %v340 = vmul.f32 0.5, %v339
    %v341 = vsub.f32 1.5, %v340
    %v342 = vmul.f32 %v337, %v341
    %vm343 = vweird.f32 %v336
    %vm344 = vweird.f32 %v337
    %vm345 = vmor %vm343, %vm344
    %v346 = vsel %vm345, %v337, %v342
    %v348 = vperm.slane %v346, 0
    %v350 = vmul.f32 %v323, %v348
    %v351 = vmax.f32 %v350, 0.0
    %v353 = vperm.slane %v300, 0
    %v354 = vperm.slane %v300, 1
    %v357 = vsel %vm306, %v353, 0.0
    %v358 = vsel %vm306, %v354, 0.0
    %v359 = vadd.f32 %v357, %v358
    %360 = vadd.xlane.f32.xlu0 %v359
    %v361 = vpop.xlane.xlu0 %360
    %v362 = vmul.f32 %v361, %v318
    %v364 = vperm.slane %v362, 0
    %v366 = vsub.f32 %v300, %v364
    %v367 = vmul.f32 %v366, %v366
    %v369 = vperm.slane %v367, 0
    %v370 = vperm.slane %v367, 1
    %v373 = vsel %vm306, %v369, 0.0
    %v374 = vsel %vm306, %v370, 0.0
    %v375 = vadd.f32 %v373, %v374
    %376 = vadd.xlane.f32.xlu0 %v375
    %v377 = vpop.xlane.xlu0 %376
    %v378 = vmul.f32 %v377, %v318
    %v379 = vadd.f32 %v378, 1e-05
    %v380 = vrsqrt.pop %v379
    %v381 = vmul.f32 %v380, %v379
    %v382 = vmul.f32 %v381, %v380
    %v383 = vmul.f32 0.5, %v382
    %v384 = vsub.f32 1.5, %v383
    %v385 = vmul.f32 %v380, %v384
    %vm386 = vweird.f32 %v379
    %vm387 = vweird.f32 %v380
    %vm388 = vmor %vm386, %vm387
    %v389 = vsel %vm388, %v380, %v385
    %v391 = vperm.slane %v389, 0
    %v393 = vmul.f32 %v366, %v391
    %v394 = vmax.f32 %v393, 0.0
    %v396 = vperm.slane %v351, 0
    %v397 = vperm.slane %v351, 1
    %400 = vrot.lane.b32.xlu0 %v396, 127
    %v401 = vpop.permute.xlu0 %400
    %402 = vrot.lane.b32.xlu0 %v397, 127
    %v403 = vpop.permute.xlu0 %402
    %v404 = vlaneseq
    %v405 = vand.u32 %v404, 127
    %vm406 = vcmp.lt.s32.totalorder %v405, 127
    %v407 = vsel %vm406, %v401, %v403
    %v408 = vsel %vm406, %v403, %v401
    %409 = vrot.lane.b32.xlu0 %v396, 112
    %v410 = vpop.permute.xlu0 %409
    %411 = vrot.lane.b32.xlu0 %v397, 112
    %v412 = vpop.permute.xlu0 %411
    %vm413 = vcmp.lt.s32.totalorder %v405, 112
    %v414 = vsel %vm413, %v410, %v412
    %v415 = vsel %vm413, %v412, %v410
    %416 = vrot.lane.b32.xlu0 %v396, 111
    %v417 = vpop.permute.xlu0 %416
    %418 = vrot.lane.b32.xlu0 %v397, 111
    %v419 = vpop.permute.xlu0 %418
    %vm420 = vcmp.lt.s32.totalorder %v405, 111
    %v421 = vsel %vm420, %v417, %v419
    %v422 = vsel %vm420, %v419, %v417
    %v424 = vperm.slane %v394, 0
    %v425 = vperm.slane %v394, 1
    %428 = vrot.lane.b32.xlu0 %v424, 127
    %v429 = vpop.permute.xlu0 %428
    %430 = vrot.lane.b32.xlu0 %v425, 127
    %v431 = vpop.permute.xlu0 %430
    %v432 = vsel %vm406, %v429, %v431
    %v433 = vsel %vm406, %v431, %v429
    %434 = vrot.lane.b32.xlu0 %v424, 112
    %v435 = vpop.permute.xlu0 %434
    %436 = vrot.lane.b32.xlu0 %v425, 112
    %v437 = vpop.permute.xlu0 %436
    %v438 = vsel %vm413, %v435, %v437
    %v439 = vsel %vm413, %v437, %v435
    %440 = vrot.lane.b32.xlu0 %v424, 111
    %v441 = vpop.permute.xlu0 %440
    %442 = vrot.lane.b32.xlu0 %v425, 111
    %v443 = vpop.permute.xlu0 %442
    %v444 = vsel %vm420, %v441, %v443
    %v445 = vsel %vm420, %v443, %v441
    %s446 = sld [smem:[#allocation7]]
    %v447 = vstv %s446
    %v448 = vmul.f32 %v447, %v351
    %s449 = sld [smem:[#allocation7 + $0x1]]
    %v450 = vstv %s449
    %v451 = vmul.f32 %v450, %v407
    %v452 = vmul.f32 %v450, %v408
    %v455 = vrot.slane %v452, 7
    %v456 = vsel %vm306, %v451, %v455
    %v458 = vadd.f32 %v448, %v456
    %s459 = sld [smem:[#allocation7 + $0x2]]
    %v460 = vstv %s459
    %v461 = vmul.f32 %v460, %v414
    %v462 = vmul.f32 %v460, %v415
    %v465 = vrot.slane %v462, 7
    %v466 = vsel %vm306, %v461, %v465
    %v468 = vadd.f32 %v458, %v466
    %s469 = sld [smem:[#allocation7 + $0x3]]
    %v470 = vstv %s469
    %v471 = vmul.f32 %v470, %v421
    %v472 = vmul.f32 %v470, %v422
    %v475 = vrot.slane %v472, 7
    %v476 = vsel %vm306, %v471, %v475
    %v478 = vadd.f32 %v468, %v476
    %s479 = sld [smem:[#allocation7 + $0x4]]
    %v480 = vstv %s479
    %v481 = vmul.f32 %v480, %v394
    %v482 = vadd.f32 %v478, %v481
    %s483 = sld [smem:[#allocation7 + $0x5]]
    %v484 = vstv %s483
    %v485 = vmul.f32 %v484, %v432
    %v486 = vmul.f32 %v484, %v433
    %v489 = vrot.slane %v486, 7
    %v490 = vsel %vm306, %v485, %v489
    %v492 = vadd.f32 %v482, %v490
    %s493 = sld [smem:[#allocation7 + $0x6]]
    %v494 = vstv %s493
    %v495 = vmul.f32 %v494, %v438
    %v496 = vmul.f32 %v494, %v439
    %v499 = vrot.slane %v496, 7
    %v500 = vsel %vm306, %v495, %v499
    %v502 = vadd.f32 %v492, %v500
    %s503 = sld [smem:[#allocation7 + $0x7]]
    %v504 = vstv %s503
    %v505 = vmul.f32 %v504, %v444
    %v506 = vmul.f32 %v504, %v445
    %v509 = vrot.slane %v506, 7
    %v510 = vsel %vm306, %v505, %v509
    %v512 = vadd.f32 %v502, %v510
    %s513 = sld [smem:[#allocation7 + $0x80]]
    %v514 = vstv %s513
    %v515 = vmul.f32 %v514, %v351
    %s516 = sld [smem:[#allocation7 + $0x81]]
    %v517 = vstv %s516
    %v518 = vmul.f32 %v517, %v407
    %v519 = vmul.f32 %v517, %v408
    %v522 = vrot.slane %v519, 7
    %v523 = vsel %vm306, %v518, %v522
    %v525 = vadd.f32 %v515, %v523
    %s526 = sld [smem:[#allocation7 + $0x82]]
    %v527 = vstv %s526
    %v528 = vmul.f32 %v527, %v414
    %v529 = vmul.f32 %v527, %v415
    %v532 = vrot.slane %v529, 7
    %v533 = vsel %vm306, %v528, %v532
    %v535 = vadd.f32 %v525, %v533
    %s536 = sld [smem:[#allocation7 + $0x83]]
    %v537 = vstv %s536
    %v538 = vmul.f32 %v537, %v421
    %v539 = vmul.f32 %v537, %v422
    %v542 = vrot.slane %v539, 7
    %v543 = vsel %vm306, %v538, %v542
    %v545 = vadd.f32 %v535, %v543
    %s546 = sld [smem:[#allocation7 + $0x84]]
    %v547 = vstv %s546
    %v548 = vmul.f32 %v547, %v394
    %v549 = vadd.f32 %v545, %v548
    %s550 = sld [smem:[#allocation7 + $0x85]]
    %v551 = vstv %s550
    %v552 = vmul.f32 %v551, %v432
    %v553 = vmul.f32 %v551, %v433
    %v556 = vrot.slane %v553, 7
    %v557 = vsel %vm306, %v552, %v556
    %v559 = vadd.f32 %v549, %v557
    %s560 = sld [smem:[#allocation7 + $0x86]]
    %v561 = vstv %s560
    %v562 = vmul.f32 %v561, %v438
    %v563 = vmul.f32 %v561, %v439
    %v566 = vrot.slane %v563, 7
    %v567 = vsel %vm306, %v562, %v566
    %v569 = vadd.f32 %v559, %v567
    %s570 = sld [smem:[#allocation7 + $0x87]]
    %v571 = vstv %s570
    %v572 = vmul.f32 %v571, %v444
    %v573 = vmul.f32 %v571, %v445
    %v576 = vrot.slane %v573, 7
    %v577 = vsel %vm306, %v572, %v576
    %v579 = vadd.f32 %v569, %v577
    %v580 = vld [vmem:[%s4] sm:$0x3]
    %v581 = vmul.f32 %v512, %v580
    %v583 = vperm.slane %v581, 0
    %v584 = vperm.slane %v581, 1
    %v587 = vsel %vm306, %v583, 0.0
    %v588 = vsel %vm306, %v584, 0.0
    %v589 = vadd.f32 %v587, %v588
    %590 = vadd.xlane.f32.xlu0 %v589
    %v591 = vpop.xlane.xlu0 %590
    %v592 = vmul.f32 %v591, 0.0044444446
    %v594 = vperm.slane %v592, 0
    %v596 = vsub.f32 %v581, %v594
    %v597 = vmul.f32 %v596, %v580
    %v598 = vmul.f32 %v597, %v597
    %v600 = vperm.slane %v598, 0
    %v601 = vperm.slane %v598, 1
    %v604 = vsel %vm306, %v600, 0.0
    %v605 = vsel %vm306, %v601, 0.0
    %v606 = vadd.f32 %v604, %v605
    %607 = vadd.xlane.f32.xlu0 %v606
    %v608 = vpop.xlane.xlu0 %607
    %v609 = vmul.f32 %v608, 0.0044444446
    %v610 = vadd.f32 %v609, 1e-05
    %v611 = vrsqrt.pop %v610
    %v612 = vmul.f32 %v611, %v610
    %v613 = vmul.f32 %v612, %v611
    %v614 = vmul.f32 0.5, %v613
    %v615 = vsub.f32 1.5, %v614
    %v616 = vmul.f32 %v611, %v615
    %vm617 = vweird.f32 %v610
    %vm618 = vweird.f32 %v611
    %vm619 = vmor %vm617, %vm618
    %v620 = vsel %vm619, %v611, %v616
    %v622 = vperm.slane %v620, 0
    %v624 = vmul.f32 %v596, %v622
    %v625 = vmax.f32 %v624, 0.0
    %v626 = vmul.f32 %v579, %v580
    %v628 = vperm.slane %v626, 0
    %v629 = vperm.slane %v626, 1
    %v632 = vsel %vm306, %v628, 0.0
    %v633 = vsel %vm306, %v629, 0.0
    %v634 = vadd.f32 %v632, %v633
    %635 = vadd.xlane.f32.xlu0 %v634
    %v636 = vpop.xlane.xlu0 %635
    %v637 = vmul.f32 %v636, 0.0044444446
    %v639 = vperm.slane %v637, 0
    %v641 = vsub.f32 %v626, %v639
    %v642 = vmul.f32 %v641, %v580
    %v643 = vmul.f32 %v642, %v642
    %v645 = vperm.slane %v643, 0
    %v646 = vperm.slane %v643, 1
    %v649 = vsel %vm306, %v645, 0.0
    %v650 = vsel %vm306, %v646, 0.0
    %v651 = vadd.f32 %v649, %v650
    %652 = vadd.xlane.f32.xlu0 %v651
    %v653 = vpop.xlane.xlu0 %652
    %v654 = vmul.f32 %v653, 0.0044444446
    %v655 = vadd.f32 %v654, 1e-05
    %v656 = vrsqrt.pop %v655
    %v657 = vmul.f32 %v656, %v655
    %v658 = vmul.f32 %v657, %v656
    %v659 = vmul.f32 0.5, %v658
    %v660 = vsub.f32 1.5, %v659
    %v661 = vmul.f32 %v656, %v660
    %vm662 = vweird.f32 %v655
    %vm663 = vweird.f32 %v656
    %vm664 = vmor %vm662, %vm663
    %v665 = vsel %vm664, %v656, %v661
    %v667 = vperm.slane %v665, 0
    %v669 = vmul.f32 %v641, %v667
    %v670 = vmax.f32 %v669, 0.0
    %v672 = vperm.slane %v625, 0
    %v673 = vperm.slane %v625, 1
    %v677 = vperm.slane %v670, 0
    %v678 = vperm.slane %v670, 1
    %v681 = vpack.c.bf16 %v672, %v672
    %v682 = vpack.c.bf16 %v673, %v673
    %v683 = vpack.c.bf16 %v677, %v677
    %v684 = vpack.c.bf16 %v678, %v678
    %s685 = smul.u32 4, 64
    %s686 = smul.u32 %s685, 2
    %s687 = sshll.u32 %s686, 4
    %688 = dma.done [#allocation3], %s687
    %v689 = vld [vmem:[#allocation2] sm:$0xff]
    %v690 = vld [vmem:[#allocation2 + $0x8] sm:$0xff]
    %v691 = vld [vmem:[#allocation2 + $0x10] sm:$0xff]
    %v692 = vld [vmem:[#allocation2 + $0x18] sm:$0xff]
    %v693 = vld [vmem:[#allocation2 + $0x20] sm:$0xff]
    %v694 = vld [vmem:[#allocation2 + $0x28] sm:$0xff]
    %v695 = vld [vmem:[#allocation2 + $0x30] sm:$0xff]
    %v696 = vld [vmem:[#allocation2 + $0x38] sm:$0xff]
    %v697 = vld [vmem:[#allocation2 + $0x40] sm:$0xff]
    %v698 = vld [vmem:[#allocation2 + $0x48] sm:$0xff]
    %v699 = vld [vmem:[#allocation2 + $0x50] sm:$0xff]
    %v700 = vld [vmem:[#allocation2 + $0x58] sm:$0xff]
    %v701 = vld [vmem:[#allocation2 + $0x60] sm:$0xff]
    %v702 = vld [vmem:[#allocation2 + $0x68] sm:$0xff]
    %v703 = vld [vmem:[#allocation2 + $0x70] sm:$0xff]
    %v704 = vld [vmem:[#allocation2 + $0x78] sm:$0xff]
    %v705 = vld [vmem:[#allocation2 + $0x80] sm:$0xff]
    %v706 = vld [vmem:[#allocation2 + $0x88] sm:$0xff]
    %v707 = vld [vmem:[#allocation2 + $0x90] sm:$0xff]
    %v708 = vld [vmem:[#allocation2 + $0x98] sm:$0xff]
    %v709 = vld [vmem:[#allocation2 + $0xa0] sm:$0xff]
    %v710 = vld [vmem:[#allocation2 + $0xa8] sm:$0xff]
    %v711 = vld [vmem:[#allocation2 + $0xb0] sm:$0xff]
    %v712 = vld [vmem:[#allocation2 + $0xb8] sm:$0xff]
    %v713 = vld [vmem:[#allocation2 + $0xc0] sm:$0xff]
    %v714 = vld [vmem:[#allocation2 + $0xc8] sm:$0xff]
    %v715 = vld [vmem:[#allocation2 + $0xd0] sm:$0xff]
    %v716 = vld [vmem:[#allocation2 + $0xd8] sm:$0xff]
    %v717 = vld [vmem:[#allocation2 + $0xe0] sm:$0xff]
    %v718 = vld [vmem:[#allocation2 + $0xe8] sm:$0xff]
    %v719 = vld [vmem:[#allocation2 + $0xf0] sm:$0xff]
    %v720 = vld [vmem:[#allocation2 + $0xf8] sm:$0xff]
    %v721 = vld [vmem:[#allocation2 + $0x100] sm:$0xff]
    %v722 = vld [vmem:[#allocation2 + $0x108] sm:$0xff]
    %v723 = vld [vmem:[#allocation2 + $0x110] sm:$0xff]
    %v724 = vld [vmem:[#allocation2 + $0x118] sm:$0xff]
    %v725 = vld [vmem:[#allocation2 + $0x120] sm:$0xff]
    %v726 = vld [vmem:[#allocation2 + $0x128] sm:$0xff]
    %v727 = vld [vmem:[#allocation2 + $0x130] sm:$0xff]
    %v728 = vld [vmem:[#allocation2 + $0x138] sm:$0xff]
    %v729 = vld [vmem:[#allocation2 + $0x140] sm:$0xff]
    %v730 = vld [vmem:[#allocation2 + $0x148] sm:$0xff]
    %v731 = vld [vmem:[#allocation2 + $0x150] sm:$0xff]
    %v732 = vld [vmem:[#allocation2 + $0x158] sm:$0xff]
    %v733 = vld [vmem:[#allocation2 + $0x160] sm:$0xff]
    %v734 = vld [vmem:[#allocation2 + $0x168] sm:$0xff]
    %v735 = vld [vmem:[#allocation2 + $0x170] sm:$0xff]
    %v736 = vld [vmem:[#allocation2 + $0x178] sm:$0xff]
    %v737 = vld [vmem:[#allocation2 + $0x180] sm:$0xff]
    %v738 = vld [vmem:[#allocation2 + $0x188] sm:$0xff]
    %v739 = vld [vmem:[#allocation2 + $0x190] sm:$0xff]
    %v740 = vld [vmem:[#allocation2 + $0x198] sm:$0xff]
    %v741 = vld [vmem:[#allocation2 + $0x1a0] sm:$0xff]
    %v742 = vld [vmem:[#allocation2 + $0x1a8] sm:$0xff]
    %v743 = vld [vmem:[#allocation2 + $0x1b0] sm:$0xff]
    %v744 = vld [vmem:[#allocation2 + $0x1b8] sm:$0xff]
    %v745 = vld [vmem:[#allocation2 + $0x1c0] sm:$0xff]
    %v746 = vld [vmem:[#allocation2 + $0x1c8] sm:$0xff]
    %v747 = vld [vmem:[#allocation2 + $0x1d0] sm:$0xff]
    %v748 = vld [vmem:[#allocation2 + $0x1d8] sm:$0xff]
    %v749 = vld [vmem:[#allocation2 + $0x1e0] sm:$0xff]
    %v750 = vld [vmem:[#allocation2 + $0x1e8] sm:$0xff]
    %v751 = vld [vmem:[#allocation2 + $0x1f0] sm:$0xff]
    %v752 = vld [vmem:[#allocation2 + $0x1f8] sm:$0xff]
    %s753 = sld [smem:[#allocation9]]
    %v754 = vld [vmem:[%s5] ss:$2 sm:$0x3]
    %v755 = vstv %s753
    %v756 = vmul.f32 %v755, %v754
    %v821 = vunpack.c.l.b16 %v689
    %v822 = vunpack.c.h.b16 %v689
    %v823 = vunpack.c.l.b16 %v690
    %v824 = vunpack.c.h.b16 %v690
    %v825 = vunpack.c.l.b16 %v691
    %v826 = vunpack.c.h.b16 %v691
    %v827 = vunpack.c.l.b16 %v692
    %v828 = vunpack.c.h.b16 %v692
    %v829 = vunpack.c.l.b16 %v693
    %v830 = vunpack.c.h.b16 %v693
    %v831 = vunpack.c.l.b16 %v694
    %v832 = vunpack.c.h.b16 %v694
    %v833 = vunpack.c.l.b16 %v695
    %v834 = vunpack.c.h.b16 %v695
    %v835 = vunpack.c.l.b16 %v696
    %v836 = vunpack.c.h.b16 %v696
    %v837 = vunpack.c.l.b16 %v697
    %v838 = vunpack.c.h.b16 %v697
    %v839 = vunpack.c.l.b16 %v698
    %v840 = vunpack.c.h.b16 %v698
    %v841 = vunpack.c.l.b16 %v699
    %v842 = vunpack.c.h.b16 %v699
    %v843 = vunpack.c.l.b16 %v700
    %v844 = vunpack.c.h.b16 %v700
    %v845 = vunpack.c.l.b16 %v701
    %v846 = vunpack.c.h.b16 %v701
    %v847 = vunpack.c.l.b16 %v702
    %v848 = vunpack.c.h.b16 %v702
    %v849 = vunpack.c.l.b16 %v703
    %v850 = vunpack.c.h.b16 %v703
    %v851 = vunpack.c.l.b16 %v704
    %v852 = vunpack.c.h.b16 %v704
    %v853 = vunpack.c.l.b16 %v705
    %v854 = vunpack.c.h.b16 %v705
    %v855 = vunpack.c.l.b16 %v706
    %v856 = vunpack.c.h.b16 %v706
    %v857 = vunpack.c.l.b16 %v707
    %v858 = vunpack.c.h.b16 %v707
    %v859 = vunpack.c.l.b16 %v708
    %v860 = vunpack.c.h.b16 %v708
    %v861 = vunpack.c.l.b16 %v709
    %v862 = vunpack.c.h.b16 %v709
    %v863 = vunpack.c.l.b16 %v710
    %v864 = vunpack.c.h.b16 %v710
    %v865 = vunpack.c.l.b16 %v711
    %v866 = vunpack.c.h.b16 %v711
    %v867 = vunpack.c.l.b16 %v712
    %v868 = vunpack.c.h.b16 %v712
    %v869 = vunpack.c.l.b16 %v713
    %v870 = vunpack.c.h.b16 %v713
    %v871 = vunpack.c.l.b16 %v714
    %v872 = vunpack.c.h.b16 %v714
    %v873 = vunpack.c.l.b16 %v715
    %v874 = vunpack.c.h.b16 %v715
    %v875 = vunpack.c.l.b16 %v716
    %v876 = vunpack.c.h.b16 %v716
    %v877 = vunpack.c.l.b16 %v717
    %v878 = vunpack.c.h.b16 %v717
    %v879 = vunpack.c.l.b16 %v718
    %v880 = vunpack.c.h.b16 %v718
    %v881 = vunpack.c.l.b16 %v719
    %v882 = vunpack.c.h.b16 %v719
    %v883 = vunpack.c.l.b16 %v720
    %v884 = vunpack.c.h.b16 %v720
    %v885 = vunpack.c.l.b16 %v721
    %v886 = vunpack.c.h.b16 %v721
    %v887 = vunpack.c.l.b16 %v722
    %v888 = vunpack.c.h.b16 %v722
    %v889 = vunpack.c.l.b16 %v723
    %v890 = vunpack.c.h.b16 %v723
    %v891 = vunpack.c.l.b16 %v724
    %v892 = vunpack.c.h.b16 %v724
    %v893 = vunpack.c.l.b16 %v725
    %v894 = vunpack.c.h.b16 %v725
    %v895 = vunpack.c.l.b16 %v726
    %v896 = vunpack.c.h.b16 %v726
    %v897 = vunpack.c.l.b16 %v727
    %v898 = vunpack.c.h.b16 %v727
    %v899 = vunpack.c.l.b16 %v728
    %v900 = vunpack.c.h.b16 %v728
    %v901 = vunpack.c.l.b16 %v729
    %v902 = vunpack.c.h.b16 %v729
    %v903 = vunpack.c.l.b16 %v730
    %v904 = vunpack.c.h.b16 %v730
    %v905 = vunpack.c.l.b16 %v731
    %v906 = vunpack.c.h.b16 %v731
    %v907 = vunpack.c.l.b16 %v732
    %v908 = vunpack.c.h.b16 %v732
    %v909 = vunpack.c.l.b16 %v733
    %v910 = vunpack.c.h.b16 %v733
    %v911 = vunpack.c.l.b16 %v734
    %v912 = vunpack.c.h.b16 %v734
    %v913 = vunpack.c.l.b16 %v735
    %v914 = vunpack.c.h.b16 %v735
    %v915 = vunpack.c.l.b16 %v736
    %v916 = vunpack.c.h.b16 %v736
    %v917 = vunpack.c.l.b16 %v737
    %v918 = vunpack.c.h.b16 %v737
    %v919 = vunpack.c.l.b16 %v738
    %v920 = vunpack.c.h.b16 %v738
    %v921 = vunpack.c.l.b16 %v739
    %v922 = vunpack.c.h.b16 %v739
    %v923 = vunpack.c.l.b16 %v740
    %v924 = vunpack.c.h.b16 %v740
    %v925 = vunpack.c.l.b16 %v741
    %v926 = vunpack.c.h.b16 %v741
    %v927 = vunpack.c.l.b16 %v742
    %v928 = vunpack.c.h.b16 %v742
    %v929 = vunpack.c.l.b16 %v743
    %v930 = vunpack.c.h.b16 %v743
    %v931 = vunpack.c.l.b16 %v744
    %v932 = vunpack.c.h.b16 %v744
    %v933 = vunpack.c.l.b16 %v745
    %v934 = vunpack.c.h.b16 %v745
    %v935 = vunpack.c.l.b16 %v746
    %v936 = vunpack.c.h.b16 %v746
    %v937 = vunpack.c.l.b16 %v747
    %v938 = vunpack.c.h.b16 %v747
    %v939 = vunpack.c.l.b16 %v748
    %v940 = vunpack.c.h.b16 %v748
    %v941 = vunpack.c.l.b16 %v749
    %v942 = vunpack.c.h.b16 %v749
    %v943 = vunpack.c.l.b16 %v750
    %v944 = vunpack.c.h.b16 %v750
    %v945 = vunpack.c.l.b16 %v751
    %v946 = vunpack.c.h.b16 %v751
    %v947 = vunpack.c.l.b16 %v752
    %v948 = vunpack.c.h.b16 %v752
    %v949 = vpack.c.b16 %v823, %v821
    %v950 = vpack.c.b16 %v824, %v822
    %v951 = vpack.c.b16 %v827, %v825
    %v952 = vpack.c.b16 %v828, %v826
    %v953 = vpack.c.b16 %v831, %v829
    %v954 = vpack.c.b16 %v832, %v830
    %v955 = vpack.c.b16 %v835, %v833
    %v956 = vpack.c.b16 %v836, %v834
    %v957 = vpack.c.b16 %v839, %v837
    %v958 = vpack.c.b16 %v840, %v838
    %v959 = vpack.c.b16 %v843, %v841
    %v960 = vpack.c.b16 %v844, %v842
    %v961 = vpack.c.b16 %v847, %v845
    %v962 = vpack.c.b16 %v848, %v846
    %v963 = vpack.c.b16 %v851, %v849
    %v964 = vpack.c.b16 %v852, %v850
    %v965 = vpack.c.b16 %v855, %v853
    %v966 = vpack.c.b16 %v856, %v854
    %v967 = vpack.c.b16 %v859, %v857
    %v968 = vpack.c.b16 %v860, %v858
    %v969 = vpack.c.b16 %v863, %v861
    %v970 = vpack.c.b16 %v864, %v862
    %v971 = vpack.c.b16 %v867, %v865
    %v972 = vpack.c.b16 %v868, %v866
    %v973 = vpack.c.b16 %v871, %v869
    %v974 = vpack.c.b16 %v872, %v870
    %v975 = vpack.c.b16 %v875, %v873
    %v976 = vpack.c.b16 %v876, %v874
    %v977 = vpack.c.b16 %v879, %v877
    %v978 = vpack.c.b16 %v880, %v878
    %v979 = vpack.c.b16 %v883, %v881
    %v980 = vpack.c.b16 %v884, %v882
    %v981 = vpack.c.b16 %v887, %v885
    %v982 = vpack.c.b16 %v888, %v886
    %v983 = vpack.c.b16 %v891, %v889
    %v984 = vpack.c.b16 %v892, %v890
    %v985 = vpack.c.b16 %v895, %v893
    %v986 = vpack.c.b16 %v896, %v894
    %v987 = vpack.c.b16 %v899, %v897
    %v988 = vpack.c.b16 %v900, %v898
    %v989 = vpack.c.b16 %v903, %v901
    %v990 = vpack.c.b16 %v904, %v902
    %v991 = vpack.c.b16 %v907, %v905
    %v992 = vpack.c.b16 %v908, %v906
    %v993 = vpack.c.b16 %v911, %v909
    %v994 = vpack.c.b16 %v912, %v910
    %v995 = vpack.c.b16 %v915, %v913
    %v996 = vpack.c.b16 %v916, %v914
    %v997 = vpack.c.b16 %v919, %v917
    %v998 = vpack.c.b16 %v920, %v918
    %v999 = vpack.c.b16 %v923, %v921
    %v1000 = vpack.c.b16 %v924, %v922
    %v1001 = vpack.c.b16 %v927, %v925
    %v1002 = vpack.c.b16 %v928, %v926
    %v1003 = vpack.c.b16 %v931, %v929
    %v1004 = vpack.c.b16 %v932, %v930
    %v1005 = vpack.c.b16 %v935, %v933
    %v1006 = vpack.c.b16 %v936, %v934
    %v1007 = vpack.c.b16 %v939, %v937
    %v1008 = vpack.c.b16 %v940, %v938
    %v1009 = vpack.c.b16 %v943, %v941
    %v1010 = vpack.c.b16 %v944, %v942
    %v1011 = vpack.c.b16 %v947, %v945
    %v1012 = vpack.c.b16 %v948, %v946
    %v1078 = vperm.slane %v756, 0
    %v1079 = vperm.slane %v756, 1
    %1082 = vmatpush.bf16.msra.mxu0 %v963
    %1083 = vmatpush.bf16.msra.mxu0 %v961
    %1084 = vmatpush.bf16.msra.mxu0 %v959
    %1085 = vmatpush.bf16.msra.mxu0 %v957
    %1086 = vmatpush.bf16.msra.mxu0 %v955
    %1087 = vmatpush.bf16.msra.mxu0 %v953
    %1088 = vmatpush.bf16.msra.mxu0 %v951
    %1089 = vmatpush.bf16.msra.mxu0 %v949
    %1090 = vmatmul.bf16.gmra.mxu0 %v681
    %v1091 = vpop.f32.mrf.mxu0
    %v1092 = vadd.f32 %v1078, %v1091
    %v1093 = vpop.f32.mrf.mxu0
    %1094 = vdwg.mxu0
    %1095 = vmatpush.bf16.msra.mxu0 %v979
    %1096 = vmatpush.bf16.msra.mxu0 %v977
    %1097 = vmatpush.bf16.msra.mxu0 %v975
    %1098 = vmatpush.bf16.msra.mxu0 %v973
    %1099 = vmatpush.bf16.msra.mxu0 %v971
    %1100 = vmatpush.bf16.msra.mxu0 %v969
    %1101 = vmatpush.bf16.msra.mxu0 %v967
    %1102 = vmatpush.bf16.msra.mxu0 %v965
    %1103 = vmatmul.bf16.gmra.mxu0 %v682
    %v1104 = vpop.f32.mrf.mxu0
    %v1105 = vadd.f32 %v1092, %v1104
    %v1106 = vpop.f32.mrf.mxu0
    %1107 = vdwg.mxu0
    %1108 = vmatpush.bf16.msra.mxu0 %v995
    %1109 = vmatpush.bf16.msra.mxu0 %v993
    %1110 = vmatpush.bf16.msra.mxu0 %v991
    %1111 = vmatpush.bf16.msra.mxu0 %v989
    %1112 = vmatpush.bf16.msra.mxu0 %v987
    %1113 = vmatpush.bf16.msra.mxu0 %v985
    %1114 = vmatpush.bf16.msra.mxu0 %v983
    %1115 = vmatpush.bf16.msra.mxu0 %v981
    %1116 = vmatmul.bf16.gmra.mxu0 %v683
    %v1117 = vpop.f32.mrf.mxu0
    %v1118 = vadd.f32 %v1105, %v1117
    %v1119 = vpop.f32.mrf.mxu0
    %1120 = vdwg.mxu0
    %1121 = vmatpush.bf16.msra.mxu0 %v1011
    %1122 = vmatpush.bf16.msra.mxu0 %v1009
    %1123 = vmatpush.bf16.msra.mxu0 %v1007
    %1124 = vmatpush.bf16.msra.mxu0 %v1005
    %1125 = vmatpush.bf16.msra.mxu0 %v1003
    %1126 = vmatpush.bf16.msra.mxu0 %v1001
    %1127 = vmatpush.bf16.msra.mxu0 %v999
    %1128 = vmatpush.bf16.msra.mxu0 %v997
    %1129 = vmatmul.bf16.gmra.mxu0 %v684
    %v1130 = vpop.f32.mrf.mxu0
    %v1131 = vadd.f32 %v1118, %v1130
    %v1132 = vpop.f32.mrf.mxu0
    %1133 = vdwg.mxu0
    %1134 = vmatpush.bf16.msra.mxu0 %v964
    %1135 = vmatpush.bf16.msra.mxu0 %v962
    %1136 = vmatpush.bf16.msra.mxu0 %v960
    %1137 = vmatpush.bf16.msra.mxu0 %v958
    %1138 = vmatpush.bf16.msra.mxu0 %v956
    %1139 = vmatpush.bf16.msra.mxu0 %v954
    %1140 = vmatpush.bf16.msra.mxu0 %v952
    %1141 = vmatpush.bf16.msra.mxu0 %v950
    %1142 = vmatmul.bf16.gmra.mxu0 %v681
    %v1143 = vpop.f32.mrf.mxu0
    %v1144 = vadd.f32 %v1079, %v1143
    %v1145 = vpop.f32.mrf.mxu0
    %1146 = vdwg.mxu0
    %1147 = vmatpush.bf16.msra.mxu0 %v980
    %1148 = vmatpush.bf16.msra.mxu0 %v978
    %1149 = vmatpush.bf16.msra.mxu0 %v976
    %1150 = vmatpush.bf16.msra.mxu0 %v974
    %1151 = vmatpush.bf16.msra.mxu0 %v972
    %1152 = vmatpush.bf16.msra.mxu0 %v970
    %1153 = vmatpush.bf16.msra.mxu0 %v968
    %1154 = vmatpush.bf16.msra.mxu0 %v966
    %1155 = vmatmul.bf16.gmra.mxu0 %v682
    %v1156 = vpop.f32.mrf.mxu0
    %v1157 = vadd.f32 %v1144, %v1156
    %v1158 = vpop.f32.mrf.mxu0
    %1159 = vdwg.mxu0
    %1160 = vmatpush.bf16.msra.mxu0 %v996
    %1161 = vmatpush.bf16.msra.mxu0 %v994
    %1162 = vmatpush.bf16.msra.mxu0 %v992
    %1163 = vmatpush.bf16.msra.mxu0 %v990
    %1164 = vmatpush.bf16.msra.mxu0 %v988
    %1165 = vmatpush.bf16.msra.mxu0 %v986
    %1166 = vmatpush.bf16.msra.mxu0 %v984
    %1167 = vmatpush.bf16.msra.mxu0 %v982
    %1168 = vmatmul.bf16.gmra.mxu0 %v683
    %v1169 = vpop.f32.mrf.mxu0
    %v1170 = vadd.f32 %v1157, %v1169
    %v1171 = vpop.f32.mrf.mxu0
    %1172 = vdwg.mxu0
    %1173 = vmatpush.bf16.msra.mxu0 %v1012
    %1174 = vmatpush.bf16.msra.mxu0 %v1010
    %1175 = vmatpush.bf16.msra.mxu0 %v1008
    %1176 = vmatpush.bf16.msra.mxu0 %v1006
    %1177 = vmatpush.bf16.msra.mxu0 %v1004
    %1178 = vmatpush.bf16.msra.mxu0 %v1002
    %1179 = vmatpush.bf16.msra.mxu0 %v1000
    %1180 = vmatpush.bf16.msra.mxu0 %v998
    %1181 = vmatmul.bf16.gmra.mxu0 %v684
    %v1182 = vpop.f32.mrf.mxu0
    %v1183 = vadd.f32 %v1170, %v1182
    %v1184 = vpop.f32.mrf.mxu0
    %1185 = vdwg.mxu0
    %s1186 = sld [smem:[#allocation9 + $0x1]]
    %s1187 = scalar_lea.vmem %s5, 1
    %v1188 = vld [vmem:[%s1187] ss:$2 sm:$0x3]
    %v1189 = vstv %s1186
    %v1190 = vmul.f32 %v1189, %v1188
    %v1192 = vperm.slane %v1190, 0
    %v1193 = vperm.slane %v1190, 1
    %v1196 = vadd.f32 %v1131, %v1192
    %v1197 = vadd.f32 %v1183, %v1193
    %v1198 = vld [vmem:[%s6] sm:$0x3]
    %v1200 = vperm.slane %v1198, 0
    %v1201 = vperm.slane %v1198, 1
    %v1204 = vadd.f32 %v1196, %v1200
    %v1205 = vadd.f32 %v1197, %v1201
    %v1206 = vmax.f32 %v1204, 0.0
    %v1207 = vmax.f32 %v1205, 0.0
    %v1208 = vld [vmem:[%s7] sm:$0xff]
    %v1210 = vperm.slane %v1208, 0
    %v1211 = vperm.slane %v1208, 4
    %v1214 = vmul.f32 %v1206, %v1210
    %v1215 = vmul.f32 %v1207, %v1211
    %v1216 = vsel %vm306, %v1214, 0.0
    %v1217 = vsel %vm306, %v1215, 0.0
    %v1218 = vadd.f32 %v1216, %v1217
    %1219 = vadd.xlane.f32.xlu0 %v1218
    %v1220 = vpop.xlane.xlu0 %1219
    %v1221 = vperm.slane %v1208, 1
    %v1222 = vperm.slane %v1208, 5
    %v1225 = vmul.f32 %v1206, %v1221
    %v1226 = vmul.f32 %v1207, %v1222
    %v1227 = vsel %vm306, %v1225, 0.0
    %v1228 = vsel %vm306, %v1226, 0.0
    %v1229 = vadd.f32 %v1227, %v1228
    %1230 = vadd.xlane.f32.xlu0 %v1229
    %v1231 = vpop.xlane.xlu0 %1230
    %v1232 = vperm.slane %v1208, 2
    %v1233 = vperm.slane %v1208, 6
    %v1236 = vmul.f32 %v1206, %v1232
    %v1237 = vmul.f32 %v1207, %v1233
    %v1238 = vsel %vm306, %v1236, 0.0
    %v1239 = vsel %vm306, %v1237, 0.0
    %v1240 = vadd.f32 %v1238, %v1239
    %1241 = vadd.xlane.f32.xlu0 %v1240
    %v1242 = vpop.xlane.xlu0 %1241
    %v1243 = vperm.slane %v1208, 3
    %v1244 = vperm.slane %v1208, 7
    %v1247 = vmul.f32 %v1206, %v1243
    %v1248 = vmul.f32 %v1207, %v1244
    %v1249 = vsel %vm306, %v1247, 0.0
    %v1250 = vsel %vm306, %v1248, 0.0
    %v1251 = vadd.f32 %v1249, %v1250
    %1252 = vadd.xlane.f32.xlu0 %v1251
    %v1253 = vpop.xlane.xlu0 %1252
    %vm1254 = vcmask 7168
    %v1255 = vsel %vm1254, %v1220, %v1231
    %vm1256 = vcmask 15360
    %v1257 = vsel %vm1256, %v1255, %v1242
    %vm1258 = vcmask 23552
    %v1259 = vsel %vm1258, %v1257, %v1253
    %v1260 = vld [vmem:[%s8] sm:$0x1]
    %v1261 = vadd.f32 %v1259, %v1260
    %vm1262 = vcmask 24576
    %v1263 = vsel %vm1262, %v1261, -inf
    %1264 = vmax.xlane.f32.xlu0 %v1263
    %v1265 = vpop.xlane.xlu0 %1264
    %v1266 = vsub.f32 %v1261, %v1265
    %v1267 = vmul.f32 %v1266, 1.442695
    %v1268 = vpow.pop %v1267
    %v1269 = vsel %vm1262, %v1268, 0.0
    %1270 = vadd.xlane.f32.xlu0 %v1269
    %v1271 = vpop.xlane.xlu0 %1270
    %v1272 = vrcp.pop %v1271
    %v1273 = vmul.f32 %v1271, %v1272
    %v1274 = vsub.f32 1.0, %v1273
    %v1275 = vmul.f32 %v1272, %v1274
    %v1276 = vadd.f32 %v1272, %v1275
    %vm1277 = vweird.f32 %v1271
    %vm1278 = vweird.f32 %v1272
    %vm1279 = vmor %vm1277, %vm1278
    %v1280 = vsel %vm1279, %v1272, %v1276
    %v1281 = vand.u32 2147483647, %v1271
    %vm1282 = vcmp.eq.f32.partialorder %v1281, 8.507059e+37
    %v1283 = vand.u32 %v1271, 2147483648
    %v1284 = vor.u32 1.1754944e-38, %v1283
    %v1285 = vsel %vm1282, %v1284, %v1280
    %v1286 = vmul.f32 %v1268, %v1285
    %1287 = vst.msk [vmem:[#allocation10] sm:$0x1] %vm1262, %v1286
    // Predicated region
    $region69: #{dqn_forward.1} parent=1 // pred_check
      _
    $region70: #{dqn_forward.1} parent=1 // pred_check_branch
      %1289 = sbr.rel (0) target = $region72
    $region71: #{dqn_forward.1} parent=1 // pred_region
      %1291 = vsyncadd [#allocation5], 0
      %s1293 = sshll.u32 [#allocation10], 4
      %s1294 = int_to_ptr.vmem [resolvable:$true] %s1293
      %s1295 = sshll.u32 %s10, 4
      %s1296 = int_to_ptr.hbm [resolvable:$true] %s1295
      %1298 = dma.vmem_to_hbm [thread:$0]  %s1294, 16, %s1296, [#allocation5]
    $region72: #{dqn_forward.1} parent=1 // pred_fallthru
      _
    // Predicated region
    $region73: #{dqn_forward.1} parent=1 // pred_check
      _
    $region74: #{dqn_forward.1} parent=1 // pred_check_branch
      %1300 = sbr.rel (0) target = $region76
    $region75: #{dqn_forward.1} parent=1 // pred_region
      %1302 = dma.done [#allocation5], 16
    $region76: #{dqn_forward.1} parent=1 // pred_fallthru
      _
    %1303 = vsyncpa [#allocation5], 1
    %1304 = vsyncpa [#allocation6], 1
    %1305 = vsyncpa [#allocation8], 1
  %1306 = vsyncmov [#allocation3]
  %s1307 = vpop.sfrf %1306
  %p1308 = scmp.eq.s32.totalorder %s1307, 0
  %p1309 = pneg %p1308
  %1311 = shalt.err (%p1309)

</llo_original>
